<compile_context>
chip_gen: v7x
topology: tpu7x:2x2x1
jax: 0.10.0
libtpu: 0.0.40
codegen_flags: <defaults>
</compile_context>

<pallas_src>
import functools

import jax
import jax.numpy as jnp
from jax.experimental import pallas as pl
from jax.experimental.pallas import tpu as pltpu


def _round_up(a, b):
    return (a + b - 1) // b * b


# ---------------------------------------------------------------------------
# Shared per-tile compute (elementwise math in f32; gate matmuls bf16 -> f32 acc).
# ---------------------------------------------------------------------------
def _grut_compute(h, x, m, d, prex,
                  w_dg_x, b_dg_x, mean, w_dg_h, b_dg_h,
                  w_x, w_m, b_g, w_h, w_hu, *, Hp, gamma_x, gamma_h):
    f32, bf16 = jnp.float32, jnp.bfloat16
    # --- input decay ---
    if gamma_x:
        gx = jnp.exp(-jnp.maximum(0.0, w_dg_x * d + b_dg_x))
        x = m * x + (1.0 - m) * (gx * prex + (1.0 - gx) * mean)
    else:
        x = m * x + (1.0 - m) * prex
    # --- hidden decay (kept in f32: exp(-relu(.)) is sensitive to d error) ---
    if gamma_h:
        gh = jnp.exp(-jnp.maximum(
            0.0, jnp.dot(d, w_dg_h, preferred_element_type=f32) + b_dg_h))
        h = gh * h
    # --- fused gate matmuls: x and m each against packed [Wr|Wz|Wu] (Ip, 3Hp) ---
    g = (jnp.dot(x.astype(bf16), w_x, preferred_element_type=f32)
         + jnp.dot(m.astype(bf16), w_m, preferred_element_type=f32) + b_g)
    hh = jnp.dot(h.astype(bf16), w_h, preferred_element_type=f32)   # [Whr|Whz]
    # sigmoid via tanh identity -> one EUP op per element instead of exp + recip.
    r = 0.5 + 0.5 * jnp.tanh(0.5 * (g[:, 0:Hp] + hh[:, 0:Hp]))
    z = 0.5 + 0.5 * jnp.tanh(0.5 * (g[:, Hp:2 * Hp] + hh[:, Hp:2 * Hp]))
    u = jnp.tanh(g[:, 2 * Hp:]
                 + jnp.dot((r * h).astype(bf16), w_hu, preferred_element_type=f32))
    dh = z * (u - h)
    return h + dh, dh, x            # h_post = (1-z)*h + z*u = h + dh


# ---------------------------------------------------------------------------
# Kernels
# ---------------------------------------------------------------------------
def grut_cell_kernel(h_ref, x_ref, m_ref, d_ref, prex_ref,
                     w_dg_x_ref, b_dg_x_ref, mean_ref, w_dg_h_ref, b_dg_h_ref,
                     w_x_ref, w_m_ref, b_g_ref, w_h_ref, w_hu_ref,
                     out_ref, *, Hp, gamma_x, gamma_h):
    f32 = jnp.float32
    h_post, dh, x_new = _grut_compute(
        h_ref[...].astype(f32), x_ref[...].astype(f32), m_ref[...].astype(f32),
        d_ref[...].astype(f32), prex_ref[...].astype(f32),
        w_dg_x_ref[...], b_dg_x_ref[...], mean_ref[...],
        w_dg_h_ref[...], b_dg_h_ref[...],
        w_x_ref[...], w_m_ref[...], b_g_ref[...], w_h_ref[...], w_hu_ref[...],
        Hp=Hp, gamma_x=gamma_x, gamma_h=gamma_h)
    # lane-dense fused output slab [h_post | dh | x]; direct slice stores (no concat).
    out_ref[:, 0:Hp] = h_post
    out_ref[:, Hp:2 * Hp] = dh
    out_ref[:, 2 * Hp:] = x_new


def grut_seq_kernel(h0_ref, x_ref, m_ref, d_ref, prex_ref,
                    w_dg_x_ref, b_dg_x_ref, mean_ref, w_dg_h_ref, b_dg_h_ref,
                    w_x_ref, w_m_ref, b_g_ref, w_h_ref, w_hu_ref,
                    out_ref, h_scr, *, Hp, gamma_x, gamma_h):
    f32 = jnp.float32

    @pl.when(pl.program_id(1) == 0)          # first timestep of this batch tile
    def _():
        h_scr[...] = h0_ref[...].astype(f32)

    h_post, dh, x_new = _grut_compute(
        h_scr[...], x_ref[...].astype(f32), m_ref[...].astype(f32),
        d_ref[...].astype(f32), prex_ref[...].astype(f32),
        w_dg_x_ref[...], b_dg_x_ref[...], mean_ref[...],
        w_dg_h_ref[...], b_dg_h_ref[...],
        w_x_ref[...], w_m_ref[...], b_g_ref[...], w_h_ref[...], w_hu_ref[...],
        Hp=Hp, gamma_x=gamma_x, gamma_h=gamma_h)
    out_ref[:, 0:Hp] = h_post
    out_ref[:, Hp:2 * Hp] = dh
    out_ref[:, 2 * Hp:] = x_new
    h_scr[...] = h_post                       # carry h in VMEM across the time axis


# ---------------------------------------------------------------------------
# One-time weight packing: transpose, concat along N, zero-pad I/H to 128, cast.
# ---------------------------------------------------------------------------
def pack_params(p):
    f32, bf16 = jnp.float32, jnp.bfloat16
    I = int(p["w_dg_x"].shape[0])
    H = int(p["b_dg_h"].shape[0])
    Ip, Hp = _round_up(I, 128), _round_up(H, 128)

    def pad2(a, rows, cols):
        a = jnp.asarray(a, f32)
        return jnp.pad(a, ((0, rows - a.shape[0]), (0, cols - a.shape[1])))

    def pad_row(a, cols):                     # 1D -> (1, cols)
        a = jnp.asarray(a, f32).reshape(1, -1)
        return jnp.pad(a, ((0, 0), (0, cols - a.shape[1])))

    def gate_w(w, rows, cols):                # torch Linear weight (out, in) -> (in, out), padded
        return pad2(jnp.asarray(w, f32).T, rows, cols)

    w_x = jnp.concatenate([gate_w(p["w_xr"], Ip, Hp), gate_w(p["w_xz"], Ip, Hp),
                           gate_w(p["w_xh"], Ip, Hp)], axis=1)        # (Ip, 3Hp)
    w_m = jnp.concatenate([gate_w(p["w_mr"], Ip, Hp), gate_w(p["w_mz"], Ip, Hp),
                           gate_w(p["w_mu"], Ip, Hp)], axis=1)        # (Ip, 3Hp)
    w_h = jnp.concatenate([gate_w(p["w_hr"], Hp, Hp),
                           gate_w(p["w_hz"], Hp, Hp)], axis=1)        # (Hp, 2Hp)
    b_g = jnp.concatenate([pad_row(p["b_xr"], Hp), pad_row(p["b_xz"], Hp),
                           pad_row(p["b_xh"], Hp)], axis=1)           # (1, 3Hp)
    return {
        "w_x": w_x.astype(bf16), "w_m": w_m.astype(bf16), "b_g": b_g,
        "w_h": w_h.astype(bf16), "w_hu": gate_w(p["w_hu"], Hp, Hp).astype(bf16),
        "w_dg_h": gate_w(p["w_dg_h"], Ip, Hp),                        # (Ip, Hp) f32
        "b_dg_h": pad_row(p["b_dg_h"], Hp),
        "w_dg_x": pad_row(p["w_dg_x"], Ip),
        "b_dg_x": pad_row(p["b_dg_x"], Ip),
        "mean_value": pad_row(p["mean_value"], Ip),
    }


_WEIGHT_ORDER = ("w_dg_x", "b_dg_x", "mean_value", "w_dg_h", "b_dg_h",
                 "w_x", "w_m", "b_g", "w_h", "w_hu")
_VMEM_CAP = 48 << 20           # safe on v7x (64 MiB physical) and v5e/v6e (128 MiB)


def _vmem_bytes(block_b, Ip, Hp, out_w, weight_bytes):
    in_tiles = 2 * block_b * (Hp + 4 * Ip) * 4            # double-buffered activation tiles
    out_tiles = 2 * block_b * out_w * 4                   # double-buffered output tile
    temps = block_b * ((2 * Ip + 2 * Hp) * 2              # bf16 MXU operand copies
                       + (3 * Ip + 13 * Hp) * 4)          # f32 gate pre-acts & misc temps
    # TODO(synk): weights are counted x2 (default double-buffering); on v7x use
    # pipeline_mode=pl.Buffered(1) on the constant-index weight specs to halve this.
    return 2 * weight_bytes + in_tiles + out_tiles + temps


def _pick_block_b(B, block_b, Ip, Hp, out_w, weight_bytes):
    if block_b is None:
        block_b = 256            # sweep knob: 256/512 on v6e/v7x, 128-256 on v5e
    block_b = max(16, _round_up(block_b, 16))              # bf16 sublane pairs
    block_b = min(block_b, _round_up(B, 16))
    while block_b > 16 and _vmem_bytes(block_b, Ip, Hp, out_w, weight_bytes) > _VMEM_CAP:
        block_b = max(16, _round_up(block_b // 2, 16))
    return block_b


def _vmem_limit(block_b, Ip, Hp, out_w, weight_bytes):
    need = _vmem_bytes(block_b, Ip, Hp, out_w, weight_bytes)
    return int(min(max(need * 3 // 2, 16 << 20), _VMEM_CAP))


# ---------------------------------------------------------------------------
# Single-step wrapper (matches the PyTorch forward).
# ---------------------------------------------------------------------------
def grut_cell(h, x, m, d, prex, packed, *, gamma_x=True, gamma_h=True, block_b=None):
    B, I = x.shape
    H = h.shape[1]
    Ip = packed["w_dg_x"].shape[1]
    Hp = packed["b_dg_h"].shape[1]
    out_w = 2 * Hp + Ip
    f32 = jnp.float32

    weights = [packed[n] for n in _WEIGHT_ORDER]
    weight_bytes = sum(int(a.size) * a.dtype.itemsize for a in weights)
    block_b = _pick_block_b(B, block_b, Ip, Hp, out_w, weight_bytes)
    Bp = _round_up(B, block_b)

    def pad_act(a, cols):
        pr, pc = Bp - a.shape[0], cols - a.shape[1]
        return jnp.pad(a, ((0, pr), (0, pc))) if (pr or pc) else a

    h_p = pad_act(h, Hp)
    x_p, m_p, d_p, prex_p = (pad_act(a, Ip) for a in (x, m, d, prex))

    act_i = pl.BlockSpec((block_b, Ip), lambda b: (b, 0))
    act_h = pl.BlockSpec((block_b, Hp), lambda b: (b, 0))
    # Weights: full block + constant index_map -> DMA'd once, VMEM-resident.
    resident = lambda a: pl.BlockSpec(a.shape, lambda b: (0, 0))

    kernel = functools.partial(grut_cell_kernel, Hp=Hp,
                               gamma_x=gamma_x, gamma_h=gamma_h)
    # TODO(synk): on v7x use pltpu.CORE_PARALLEL on the batch axis to shard tiles
    # across both TensorCores (plain "parallel" is kept here for portability).
    out = pl.pallas_call(
        kernel,
        grid=(Bp // block_b,),
        out_shape=jax.ShapeDtypeStruct((Bp, out_w), f32),
        in_specs=[act_h, act_i, act_i, act_i, act_i] + [resident(a) for a in weights],
        out_specs=pl.BlockSpec((block_b, out_w), lambda b: (b, 0)),
        compiler_params=pltpu.CompilerParams(
            dimension_semantics=("parallel",),
            vmem_limit_bytes=_vmem_limit(block_b, Ip, Hp, out_w, weight_bytes)),
    )(h_p, x_p, m_p, d_p, prex_p, *weights)

    return out[:B, :H], out[:B, Hp:Hp + H], out[:B, 2 * Hp:2 * Hp + I]


# ---------------------------------------------------------------------------
# Sequence wrapper: T repeated applications of the cell with h carried in VMEM.
# Weights are DMA'd from HBM once per batch tile for the whole sequence.
# ---------------------------------------------------------------------------
def grut_cell_sequence(h0, x_seq, m_seq, d_seq, prex_seq, packed, *,
                       gamma_x=True, gamma_h=True, block_b=None):
    T, B, I = x_seq.shape
    H = h0.shape[1]
    Ip = packed["w_dg_x"].shape[1]
    Hp = packed["b_dg_h"].shape[1]
    out_w = 2 * Hp + Ip
    f32 = jnp.float32

    weights = [packed[n] for n in _WEIGHT_ORDER]
    weight_bytes = sum(int(a.size) * a.dtype.itemsize for a in weights)
    block_b = _pick_block_b(B, block_b, Ip, Hp, out_w, weight_bytes)
    Bp = _round_up(B, block_b)

    def pad_h(a):
        pr, pc = Bp - a.shape[0], Hp - a.shape[1]
        return jnp.pad(a, ((0, pr), (0, pc))) if (pr or pc) else a

    def pad_seq(a):
        pr, pc = Bp - a.shape[1], Ip - a.shape[2]
        return jnp.pad(a, ((0, 0), (0, pr), (0, pc))) if (pr or pc) else a

    h0_p = pad_h(h0)
    x_p, m_p, d_p, prex_p = (pad_seq(a) for a in (x_seq, m_seq, d_seq, prex_seq))

    h0_spec = pl.BlockSpec((block_b, Hp), lambda b, t: (b, 0))
    act_seq = pl.BlockSpec((None, block_b, Ip), lambda b, t: (t, b, 0))
    resident = lambda a: pl.BlockSpec(a.shape, lambda b, t: (0, 0))

    kernel = functools.partial(grut_seq_kernel, Hp=Hp,
                               gamma_x=gamma_x, gamma_h=gamma_h)
    out = pl.pallas_call(
        kernel,
        grid=(Bp // block_b, T),
        out_shape=jax.ShapeDtypeStruct((T, Bp, out_w), f32),
        in_specs=[h0_spec, act_seq, act_seq, act_seq, act_seq]
                 + [resident(a) for a in weights],
        out_specs=pl.BlockSpec((None, block_b, out_w), lambda b, t: (t, b, 0)),
        scratch_shapes=[pltpu.VMEM((block_b, Hp), f32)],     # carried hidden state
        compiler_params=pltpu.CompilerParams(
            dimension_semantics=("parallel", "arbitrary"),
            vmem_limit_bytes=_vmem_limit(block_b, Ip, Hp, out_w, weight_bytes)),
    )(h0_p, x_p, m_p, d_p, prex_p, *weights)

    return (out[:, :B, :H], out[:, :B, Hp:Hp + H], out[:, :B, 2 * Hp:2 * Hp + I])


# ---------------------------------------------------------------------------
# Pure-JAX f32 reference mirroring the PyTorch forward, and parameter init.
# ---------------------------------------------------------------------------
def grut_cell_ref(h, x, m, d, prex, p, *, gamma_x=True, gamma_h=True):
    if gamma_x:
        gx = jnp.exp(-jnp.maximum(0.0, p["w_dg_x"] * d + p["b_dg_x"]))
        x = m * x + (1 - m) * (gx * prex + (1 - gx) * p["mean_value"])
    else:
        x = m * x + (1 - m) * prex
    if gamma_h:
        gh = jnp.exp(-jnp.maximum(0.0, d @ p["w_dg_h"].T + p["b_dg_h"]))
        h = gh * h
    r = jax.nn.sigmoid(x @ p["w_xr"].T + p["b_xr"] + h @ p["w_hr"].T + m @ p["w_mr"].T)
    z = jax.nn.sigmoid(x @ p["w_xz"].T + p["b_xz"] + h @ p["w_hz"].T + m @ p["w_mz"].T)
    u = jnp.tanh(x @ p["w_xh"].T + p["b_xh"] + (r * h) @ p["w_hu"].T + m @ p["w_mu"].T)
    h_post = (1 - z) * h + z * u
    dh = z * (u - h)
    return h_post, dh, x


def init_params(key, input_size, hidden_size):
    ks = jax.random.split(key, 16)
    s = 0.1
    nrm = lambda k, shape: (s * jax.random.normal(k, shape)).astype(jnp.float32)
    return {
        "w_dg_x": nrm(ks[0], (input_size,)),
        "b_dg_x": nrm(ks[1], (input_size,)),
        "w_dg_h": nrm(ks[2], (hidden_size, input_size)),
        "b_dg_h": nrm(ks[3], (hidden_size,)),
        "w_xh": nrm(ks[4], (hidden_size, input_size)),
        "b_xh": nrm(ks[5], (hidden_size,)),
        "w_xz": nrm(ks[6], (hidden_size, input_size)),
        "b_xz": nrm(ks[7], (hidden_size,)),
        "w_xr": nrm(ks[8], (hidden_size, input_size)),
        "b_xr": nrm(ks[9], (hidden_size,)),
        "w_hu": nrm(ks[10], (hidden_size, hidden_size)),
        "w_hz": nrm(ks[11], (hidden_size, hidden_size)),
        "w_hr": nrm(ks[12], (hidden_size, hidden_size)),
        "w_mu": nrm(ks[13], (hidden_size, input_size)),
        "w_mz": nrm(ks[14], (hidden_size, input_size)),
        "w_mr": nrm(ks[15], (hidden_size, input_size)),
        # mean_value is assigned externally in the original module; set it here.
        "mean_value": jnp.linspace(-0.5, 0.5, input_size, dtype=jnp.float32),
    }


if __name__ == "__main__":
    # Small shapes: B=24 with block_b=16 exercises batch tiling + tail padding;
    # I=16 / H=32 exercise the lane padding to 128.
    B, I, H, T = 24, 16, 32, 5
    key = jax.random.PRNGKey(0)
    kp, kh, kx, km, kd, kpx, ks = jax.random.split(key, 7)

    params = init_params(kp, I, H)
    packed = pack_params(params)

    h = jax.random.normal(kh, (B, H), dtype=jnp.float32)
    x = jax.random.normal(kx, (B, I), dtype=jnp.float32)
    m = jax.random.bernoulli(km, 0.6, (B, I)).astype(jnp.float32)   # observation mask
    d = jnp.abs(jax.random.normal(kd, (B, I), dtype=jnp.float32))   # time deltas
    prex = jax.random.normal(kpx, (B, I), dtype=jnp.float32)        # previous observed x

    # --- single step ---
    h_post, dh, x_new = grut_cell(h, x, m, d, prex, packed,
                                  gamma_x=True, gamma_h=True, block_b=16)
    jax.block_until_ready((h_post, dh, x_new))
    h_r, dh_r, x_r = grut_cell_ref(h, x, m, d, prex, params)
    assert jnp.allclose(h_post, h_r, atol=5e-2), "h_post mismatch"
    assert jnp.allclose(dh, dh_r, atol=5e-2), "dh mismatch"
    assert jnp.allclose(x_new, x_r, atol=1e-5), "x mismatch"

    # --- sequence (time loop inside the kernel) ---
    k1, k2, k3, k4 = jax.random.split(ks, 4)
    x_seq = jax.random.normal(k1, (T, B, I), dtype=jnp.float32)
    m_seq = jax.random.bernoulli(k2, 0.6, (T, B, I)).astype(jnp.float32)
    d_seq = jnp.abs(jax.random.normal(k3, (T, B, I), dtype=jnp.float32))
    prex_seq = jax.random.normal(k4, (T, B, I), dtype=jnp.float32)

    h_seq, dh_seq, x_seq_new = grut_cell_sequence(
        h, x_seq, m_seq, d_seq, prex_seq, packed,
        gamma_x=True, gamma_h=True, block_b=16)
    jax.block_until_ready((h_seq, dh_seq, x_seq_new))

    hc = h
    h_rs, dh_rs, x_rs = [], [], []
    for t in range(T):
        hc, dh_t, x_t = grut_cell_ref(hc, x_seq[t], m_seq[t], d_seq[t],
                                      prex_seq[t], params)
        h_rs.append(hc); dh_rs.append(dh_t); x_rs.append(x_t)
    h_rs, dh_rs, x_rs = jnp.stack(h_rs), jnp.stack(dh_rs), jnp.stack(x_rs)
    assert jnp.allclose(h_seq, h_rs, atol=5e-2), "seq h mismatch"
    assert jnp.allclose(dh_seq, dh_rs, atol=5e-2), "seq dh mismatch"
    assert jnp.allclose(x_seq_new, x_rs, atol=1e-5), "seq x mismatch"

    print("KERNEL_OK")
</pallas_src>

<mosaic_0001>
module attributes {stable_mosaic.version = 11 : i64} {
  func.func @grut_cell_kernel(%arg0: i32, %arg1: memref<16x128xf32, #tpu.memory_space<vmem>>, %arg2: memref<16x128xf32, #tpu.memory_space<vmem>>, %arg3: memref<16x128xf32, #tpu.memory_space<vmem>>, %arg4: memref<16x128xf32, #tpu.memory_space<vmem>>, %arg5: memref<16x128xf32, #tpu.memory_space<vmem>>, %arg6: memref<1x128xf32, #tpu.memory_space<vmem>>, %arg7: memref<1x128xf32, #tpu.memory_space<vmem>>, %arg8: memref<1x128xf32, #tpu.memory_space<vmem>>, %arg9: memref<128x128xf32, #tpu.memory_space<vmem>>, %arg10: memref<1x128xf32, #tpu.memory_space<vmem>>, %arg11: memref<128x384xbf16, #tpu.memory_space<vmem>>, %arg12: memref<128x384xbf16, #tpu.memory_space<vmem>>, %arg13: memref<1x384xf32, #tpu.memory_space<vmem>>, %arg14: memref<128x256xbf16, #tpu.memory_space<vmem>>, %arg15: memref<128x128xbf16, #tpu.memory_space<vmem>>, %arg16: memref<16x384xf32, #tpu.memory_space<vmem>>) attributes {dimension_semantics = [#tpu.dimension_semantics<parallel>], iteration_bounds = array<i64: 2>, scalar_prefetch = 0 : i64, scratch_operands = 0 : i64, tpu.core_type = #tpu.core_type<tc>, window_params = [{transform_indices = @transform_0, window_bounds = array<i64: 16, 128>}, {transform_indices = @transform_1, window_bounds = array<i64: 16, 128>}, {transform_indices = @transform_2, window_bounds = array<i64: 16, 128>}, {transform_indices = @transform_3, window_bounds = array<i64: 16, 128>}, {transform_indices = @transform_4, window_bounds = array<i64: 16, 128>}, {pipeline_mode = #tpu.pipeline_mode<synchronous>, transform_indices = @transform_5, window_bounds = array<i64: 1, 128>}, {pipeline_mode = #tpu.pipeline_mode<synchronous>, transform_indices = @transform_6, window_bounds = array<i64: 1, 128>}, {pipeline_mode = #tpu.pipeline_mode<synchronous>, transform_indices = @transform_7, window_bounds = array<i64: 1, 128>}, {pipeline_mode = #tpu.pipeline_mode<synchronous>, transform_indices = @transform_8, window_bounds = array<i64: 128, 128>}, {pipeline_mode = #tpu.pipeline_mode<synchronous>, transform_indices = @transform_9, window_bounds = array<i64: 1, 128>}, {pipeline_mode = #tpu.pipeline_mode<synchronous>, transform_indices = @transform_10, window_bounds = array<i64: 128, 384>}, {pipeline_mode = #tpu.pipeline_mode<synchronous>, transform_indices = @transform_11, window_bounds = array<i64: 128, 384>}, {pipeline_mode = #tpu.pipeline_mode<synchronous>, transform_indices = @transform_12, window_bounds = array<i64: 1, 384>}, {pipeline_mode = #tpu.pipeline_mode<synchronous>, transform_indices = @transform_13, window_bounds = array<i64: 128, 256>}, {pipeline_mode = #tpu.pipeline_mode<synchronous>, transform_indices = @transform_14, window_bounds = array<i64: 128, 128>}, {transform_indices = @transform_15, window_bounds = array<i64: 16, 384>}]} {
    %c0 = arith.constant 0 : index
    %c0_0 = arith.constant 0 : index
    %0 = vector.load %arg1[%c0, %c0_0] : memref<16x128xf32, #tpu.memory_space<vmem>>, vector<16x128xf32>
    %c0_1 = arith.constant 0 : index
    %c0_2 = arith.constant 0 : index
    %1 = vector.load %arg2[%c0_1, %c0_2] : memref<16x128xf32, #tpu.memory_space<vmem>>, vector<16x128xf32>
    %c0_3 = arith.constant 0 : index
    %c0_4 = arith.constant 0 : index
    %2 = vector.load %arg3[%c0_3, %c0_4] : memref<16x128xf32, #tpu.memory_space<vmem>>, vector<16x128xf32>
    %c0_5 = arith.constant 0 : index
    %c0_6 = arith.constant 0 : index
    %3 = vector.load %arg4[%c0_5, %c0_6] : memref<16x128xf32, #tpu.memory_space<vmem>>, vector<16x128xf32>
    %c0_7 = arith.constant 0 : index
    %c0_8 = arith.constant 0 : index
    %4 = vector.load %arg5[%c0_7, %c0_8] : memref<16x128xf32, #tpu.memory_space<vmem>>, vector<16x128xf32>
    %c0_9 = arith.constant 0 : index
    %c0_10 = arith.constant 0 : index
    %5 = vector.load %arg6[%c0_9, %c0_10] : memref<1x128xf32, #tpu.memory_space<vmem>>, vector<1x128xf32>
    %c0_11 = arith.constant 0 : index
    %c0_12 = arith.constant 0 : index
    %6 = vector.load %arg7[%c0_11, %c0_12] : memref<1x128xf32, #tpu.memory_space<vmem>>, vector<1x128xf32>
    %c0_13 = arith.constant 0 : index
    %c0_14 = arith.constant 0 : index
    %7 = vector.load %arg8[%c0_13, %c0_14] : memref<1x128xf32, #tpu.memory_space<vmem>>, vector<1x128xf32>
    %c0_15 = arith.constant 0 : index
    %c0_16 = arith.constant 0 : index
    %8 = vector.load %arg9[%c0_15, %c0_16] : memref<128x128xf32, #tpu.memory_space<vmem>>, vector<128x128xf32>
    %c0_17 = arith.constant 0 : index
    %c0_18 = arith.constant 0 : index
    %9 = vector.load %arg10[%c0_17, %c0_18] : memref<1x128xf32, #tpu.memory_space<vmem>>, vector<1x128xf32>
    %c0_19 = arith.constant 0 : index
    %c0_20 = arith.constant 0 : index
    %10 = vector.load %arg11[%c0_19, %c0_20] : memref<128x384xbf16, #tpu.memory_space<vmem>>, vector<128x384xbf16>
    %c0_21 = arith.constant 0 : index
    %c0_22 = arith.constant 0 : index
    %11 = vector.load %arg12[%c0_21, %c0_22] : memref<128x384xbf16, #tpu.memory_space<vmem>>, vector<128x384xbf16>
    %c0_23 = arith.constant 0 : index
    %c0_24 = arith.constant 0 : index
    %12 = vector.load %arg13[%c0_23, %c0_24] : memref<1x384xf32, #tpu.memory_space<vmem>>, vector<1x384xf32>
    %c0_25 = arith.constant 0 : index
    %c0_26 = arith.constant 0 : index
    %13 = vector.load %arg14[%c0_25, %c0_26] : memref<128x256xbf16, #tpu.memory_space<vmem>>, vector<128x256xbf16>
    %c0_27 = arith.constant 0 : index
    %c0_28 = arith.constant 0 : index
    %14 = vector.load %arg15[%c0_27, %c0_28] : memref<128x128xbf16, #tpu.memory_space<vmem>>, vector<128x128xbf16>
    %15 = vector.broadcast %5 : vector<1x128xf32> to vector<16x128xf32>
    %16 = arith.mulf %15, %3 : vector<16x128xf32>
    %17 = vector.broadcast %6 : vector<1x128xf32> to vector<16x128xf32>
    %18 = arith.addf %16, %17 : vector<16x128xf32>
    %cst = arith.constant 0.000000e+00 : f32
    %19 = vector.broadcast %cst : f32 to vector<16x128xf32>
    %20 = arith.maximumf %19, %18 : vector<16x128xf32>
    %cst_29 = arith.constant 0.000000e+00 : f32
    %21 = vector.broadcast %cst_29 : f32 to vector<16x128xf32>
    %22 = arith.subf %21, %20 : vector<16x128xf32>
    %23 = math.exp %22 : vector<16x128xf32>
    %24 = arith.mulf %2, %1 : vector<16x128xf32>
    %cst_30 = arith.constant 1.000000e+00 : f32
    %25 = vector.broadcast %cst_30 : f32 to vector<16x128xf32>
    %26 = arith.subf %25, %2 : vector<16x128xf32>
    %27 = arith.mulf %23, %4 : vector<16x128xf32>
    %cst_31 = arith.constant 1.000000e+00 : f32
    %28 = vector.broadcast %cst_31 : f32 to vector<16x128xf32>
    %29 = arith.subf %28, %23 : vector<16x128xf32>
    %30 = vector.broadcast %7 : vector<1x128xf32> to vector<16x128xf32>
    %31 = arith.mulf %29, %30 : vector<16x128xf32>
    %32 = arith.addf %27, %31 : vector<16x128xf32>
    %33 = arith.mulf %26, %32 : vector<16x128xf32>
    %34 = arith.addf %24, %33 : vector<16x128xf32>
    %cst_32 = arith.constant dense<0.000000e+00> : vector<16x128xf32>
    %35 = tpu.matmul %3, %8, %cst_32 {dimension_numbers = #tpu.dot_dimension_numbers<[1], [0], [0], [1], [0, 0, 1, 1], [], []>} : vector<16x128xf32>, vector<128x128xf32>, vector<16x128xf32> -> vector<16x128xf32>
    %36 = vector.broadcast %9 : vector<1x128xf32> to vector<16x128xf32>
    %37 = arith.addf %35, %36 : vector<16x128xf32>
    %cst_33 = arith.constant 0.000000e+00 : f32
    %38 = vector.broadcast %cst_33 : f32 to vector<16x128xf32>
    %39 = arith.maximumf %38, %37 : vector<16x128xf32>
    %cst_34 = arith.constant 0.000000e+00 : f32
    %40 = vector.broadcast %cst_34 : f32 to vector<16x128xf32>
    %41 = arith.subf %40, %39 : vector<16x128xf32>
    %42 = math.exp %41 : vector<16x128xf32>
    %43 = arith.mulf %42, %0 : vector<16x128xf32>
    %44 = arith.truncf %34 : vector<16x128xf32> to vector<16x128xbf16>
    %cst_35 = arith.constant dense<0.000000e+00> : vector<16x384xf32>
    %45 = tpu.matmul %44, %10, %cst_35 {dimension_numbers = #tpu.dot_dimension_numbers<[1], [0], [0], [1], [0, 0, 1, 1], [], []>} : vector<16x128xbf16>, vector<128x384xbf16>, vector<16x384xf32> -> vector<16x384xf32>
    %46 = arith.truncf %2 : vector<16x128xf32> to vector<16x128xbf16>
    %cst_36 = arith.constant dense<0.000000e+00> : vector<16x384xf32>
    %47 = tpu.matmul %46, %11, %cst_36 {dimension_numbers = #tpu.dot_dimension_numbers<[1], [0], [0], [1], [0, 0, 1, 1], [], []>} : vector<16x128xbf16>, vector<128x384xbf16>, vector<16x384xf32> -> vector<16x384xf32>
    %48 = arith.addf %45, %47 : vector<16x384xf32>
    %49 = vector.broadcast %12 : vector<1x384xf32> to vector<16x384xf32>
    %50 = arith.addf %48, %49 : vector<16x384xf32>
    %51 = arith.truncf %43 : vector<16x128xf32> to vector<16x128xbf16>
    %cst_37 = arith.constant dense<0.000000e+00> : vector<16x256xf32>
    %52 = tpu.matmul %51, %13, %cst_37 {dimension_numbers = #tpu.dot_dimension_numbers<[1], [0], [0], [1], [0, 0, 1, 1], [], []>} : vector<16x128xbf16>, vector<128x256xbf16>, vector<16x256xf32> -> vector<16x256xf32>
    %53 = vector.extract_strided_slice %50 {offsets = [0, 0], sizes = [16, 128], strides = [1, 1]} : vector<16x384xf32> to vector<16x128xf32>
    %54 = vector.extract_strided_slice %52 {offsets = [0, 0], sizes = [16, 128], strides = [1, 1]} : vector<16x256xf32> to vector<16x128xf32>
    %55 = arith.addf %53, %54 : vector<16x128xf32>
    %cst_38 = arith.constant 5.000000e-01 : f32
    %56 = vector.broadcast %cst_38 : f32 to vector<16x128xf32>
    %57 = arith.mulf %56, %55 : vector<16x128xf32>
    %58 = math.tanh %57 : vector<16x128xf32>
    %cst_39 = arith.constant 5.000000e-01 : f32
    %59 = vector.broadcast %cst_39 : f32 to vector<16x128xf32>
    %60 = arith.mulf %59, %58 : vector<16x128xf32>
    %cst_40 = arith.constant 5.000000e-01 : f32
    %61 = vector.broadcast %cst_40 : f32 to vector<16x128xf32>
    %62 = arith.addf %61, %60 : vector<16x128xf32>
    %63 = vector.extract_strided_slice %50 {offsets = [0, 128], sizes = [16, 128], strides = [1, 1]} : vector<16x384xf32> to vector<16x128xf32>
    %64 = vector.extract_strided_slice %52 {offsets = [0, 128], sizes = [16, 128], strides = [1, 1]} : vector<16x256xf32> to vector<16x128xf32>
    %65 = arith.addf %63, %64 : vector<16x128xf32>
    %cst_41 = arith.constant 5.000000e-01 : f32
    %66 = vector.broadcast %cst_41 : f32 to vector<16x128xf32>
    %67 = arith.mulf %66, %65 : vector<16x128xf32>
    %68 = math.tanh %67 : vector<16x128xf32>
    %cst_42 = arith.constant 5.000000e-01 : f32
    %69 = vector.broadcast %cst_42 : f32 to vector<16x128xf32>
    %70 = arith.mulf %69, %68 : vector<16x128xf32>
    %cst_43 = arith.constant 5.000000e-01 : f32
    %71 = vector.broadcast %cst_43 : f32 to vector<16x128xf32>
    %72 = arith.addf %71, %70 : vector<16x128xf32>
    %73 = vector.extract_strided_slice %50 {offsets = [0, 256], sizes = [16, 128], strides = [1, 1]} : vector<16x384xf32> to vector<16x128xf32>
    %74 = arith.mulf %62, %43 : vector<16x128xf32>
    %75 = arith.truncf %74 : vector<16x128xf32> to vector<16x128xbf16>
    %cst_44 = arith.constant dense<0.000000e+00> : vector<16x128xf32>
    %76 = tpu.matmul %75, %14, %cst_44 {dimension_numbers = #tpu.dot_dimension_numbers<[1], [0], [0], [1], [0, 0, 1, 1], [], []>} : vector<16x128xbf16>, vector<128x128xbf16>, vector<16x128xf32> -> vector<16x128xf32>
    %77 = arith.addf %73, %76 : vector<16x128xf32>
    %78 = math.tanh %77 : vector<16x128xf32>
    %79 = arith.subf %78, %43 : vector<16x128xf32>
    %80 = arith.mulf %72, %79 : vector<16x128xf32>
    %81 = arith.addf %43, %80 : vector<16x128xf32>
    %c0_45 = arith.constant 0 : index
    %c0_46 = arith.constant 0 : index
    %82 = vector.load %arg16[%c0_45, %c0_46] : memref<16x384xf32, #tpu.memory_space<vmem>>, vector<16x128xf32>
    tpu.vector_store %arg16[%c0_45, %c0_46], %81 {strides = array<i32>} : memref<16x384xf32, #tpu.memory_space<vmem>>, vector<16x128xf32>,
    %c0_47 = arith.constant 0 : index
    %c128 = arith.constant 128 : index
    %83 = vector.load %arg16[%c0_47, %c128] : memref<16x384xf32, #tpu.memory_space<vmem>>, vector<16x128xf32>
    tpu.vector_store %arg16[%c0_47, %c128], %80 {strides = array<i32>} : memref<16x384xf32, #tpu.memory_space<vmem>>, vector<16x128xf32>,
    %c0_48 = arith.constant 0 : index
    %c256 = arith.constant 256 : index
    %84 = vector.load %arg16[%c0_48, %c256] : memref<16x384xf32, #tpu.memory_space<vmem>>, vector<16x128xf32>
    tpu.vector_store %arg16[%c0_48, %c256], %34 {strides = array<i32>} : memref<16x384xf32, #tpu.memory_space<vmem>>, vector<16x128xf32>,
    return
  }
  func.func @transform_0(%arg0: i32) -> (i32, i32) {
    %c0_i32 = arith.constant 0 : i32
    %c0_i32_0 = arith.constant 0 : i32
    return %arg0, %c0_i32 : i32, i32
  }
  func.func @transform_1(%arg0: i32) -> (i32, i32) {
    %c0_i32 = arith.constant 0 : i32
    %c0_i32_0 = arith.constant 0 : i32
    return %arg0, %c0_i32 : i32, i32
  }
  func.func @transform_2(%arg0: i32) -> (i32, i32) {
    %c0_i32 = arith.constant 0 : i32
    %c0_i32_0 = arith.constant 0 : i32
    return %arg0, %c0_i32 : i32, i32
  }
  func.func @transform_3(%arg0: i32) -> (i32, i32) {
    %c0_i32 = arith.constant 0 : i32
    %c0_i32_0 = arith.constant 0 : i32
    return %arg0, %c0_i32 : i32, i32
  }
  func.func @transform_4(%arg0: i32) -> (i32, i32) {
    %c0_i32 = arith.constant 0 : i32
    %c0_i32_0 = arith.constant 0 : i32
    return %arg0, %c0_i32 : i32, i32
  }
  func.func @transform_5(%arg0: i32) -> (i32, i32) {
    %c0_i32 = arith.constant 0 : i32
    %c0_i32_0 = arith.constant 0 : i32
    %c0_i32_1 = arith.constant 0 : i32
    return %c0_i32, %c0_i32_0 : i32, i32
  }
  func.func @transform_6(%arg0: i32) -> (i32, i32) {
    %c0_i32 = arith.constant 0 : i32
    %c0_i32_0 = arith.constant 0 : i32
    %c0_i32_1 = arith.constant 0 : i32
    return %c0_i32, %c0_i32_0 : i32, i32
  }
  func.func @transform_7(%arg0: i32) -> (i32, i32) {
    %c0_i32 = arith.constant 0 : i32
    %c0_i32_0 = arith.constant 0 : i32
    %c0_i32_1 = arith.constant 0 : i32
    return %c0_i32, %c0_i32_0 : i32, i32
  }
  func.func @transform_8(%arg0: i32) -> (i32, i32) {
    %c0_i32 = arith.constant 0 : i32
    %c0_i32_0 = arith.constant 0 : i32
    %c0_i32_1 = arith.constant 0 : i32
    return %c0_i32, %c0_i32_0 : i32, i32
  }
  func.func @transform_9(%arg0: i32) -> (i32, i32) {
    %c0_i32 = arith.constant 0 : i32
    %c0_i32_0 = arith.constant 0 : i32
    %c0_i32_1 = arith.constant 0 : i32
    return %c0_i32, %c0_i32_0 : i32, i32
  }
  func.func @transform_10(%arg0: i32) -> (i32, i32) {
    %c0_i32 = arith.constant 0 : i32
    %c0_i32_0 = arith.constant 0 : i32
    %c0_i32_1 = arith.constant 0 : i32
    return %c0_i32, %c0_i32_0 : i32, i32
  }
  func.func @transform_11(%arg0: i32) -> (i32, i32) {
    %c0_i32 = arith.constant 0 : i32
    %c0_i32_0 = arith.constant 0 : i32
    %c0_i32_1 = arith.constant 0 : i32
    return %c0_i32, %c0_i32_0 : i32, i32
  }
  func.func @transform_12(%arg0: i32) -> (i32, i32) {
    %c0_i32 = arith.constant 0 : i32
    %c0_i32_0 = arith.constant 0 : i32
    %c0_i32_1 = arith.constant 0 : i32
    return %c0_i32, %c0_i32_0 : i32, i32
  }
  func.func @transform_13(%arg0: i32) -> (i32, i32) {
    %c0_i32 = arith.constant 0 : i32
    %c0_i32_0 = arith.constant 0 : i32
    %c0_i32_1 = arith.constant 0 : i32
    return %c0_i32, %c0_i32_0 : i32, i32
  }
  func.func @transform_14(%arg0: i32) -> (i32, i32) {
    %c0_i32 = arith.constant 0 : i32
    %c0_i32_0 = arith.constant 0 : i32
    %c0_i32_1 = arith.constant 0 : i32
    return %c0_i32, %c0_i32_0 : i32, i32
  }
  func.func @transform_15(%arg0: i32) -> (i32, i32) {
    %c0_i32 = arith.constant 0 : i32
    %c0_i32_0 = arith.constant 0 : i32
    return %arg0, %c0_i32 : i32, i32
  }
}

</mosaic_0001>

<llo_original>
// kernel: tpu_custom_call.1
$region0: #{tpu_custom_call.1}
  #allocation0 [shape = 'u32[]', space=smem, size = 0x4, offset = 0x4, fixed_abs, tag = 'smem constant byte address 0x4 - core index']
  #allocation1 [shape = 'u32[144,128]{1,0:T(1,128)}', space=vmem, size = 0x12000, scoped, tag = 'internal scratch']
  %s0 = inlined_call_operand.hbm [shape: f32[32,128], index: 0, kind: input, shape index: {}]
  %s1 = inlined_call_operand.hbm [shape: f32[32,128], index: 1, kind: input, shape index: {}]
  %s2 = inlined_call_operand.hbm [shape: f32[32,128], index: 2, kind: input, shape index: {}]
  %s3 = inlined_call_operand.hbm [shape: f32[32,128], index: 3, kind: input, shape index: {}]
  %s4 = inlined_call_operand.hbm [shape: f32[32,128], index: 4, kind: input, shape index: {}]
  %s5 = inlined_call_operand.vmem [shape: f32[1,128], index: 5, kind: input, shape index: {}]
  %s6 = inlined_call_operand.vmem [shape: f32[1,128], index: 6, kind: input, shape index: {}]
  %s7 = inlined_call_operand.vmem [shape: f32[1,128], index: 7, kind: input, shape index: {}]
  %s8 = inlined_call_operand.hbm [shape: f32[128,128], index: 8, kind: input, shape index: {}]
  %s9 = inlined_call_operand.vmem [shape: f32[1,128], index: 9, kind: input, shape index: {}]
  %s10 = inlined_call_operand.hbm [shape: bf16[128,384], index: 10, kind: input, shape index: {}]
  %s11 = inlined_call_operand.hbm [shape: bf16[128,384], index: 11, kind: input, shape index: {}]
  %s12 = inlined_call_operand.vmem [shape: f32[1,384], index: 12, kind: input, shape index: {}]
  %s13 = inlined_call_operand.hbm [shape: bf16[128,256], index: 13, kind: input, shape index: {}]
  %s14 = inlined_call_operand.hbm [shape: bf16[128,128], index: 14, kind: input, shape index: {}]
  %s15 = inlined_call_operand.hbm [shape: f32[32,384], index: 15, kind: output, shape index: {}]
  %s16 = sld [smem:[#allocation0]]
  $region133: #{tpu_custom_call.1} parent=0
    _
  %s18 = ssub.s32 1, %s16
  %s19 = scalar_select 0, %s18, %s16
  $region1: #{tpu_custom_call.1} parent=0
    #allocation2 [shape = 'u8[16384]{0}', space=vmem, size = 0x4000, scoped, tag = 'input window, operand 0']
    #allocation3 [shape = 's32[2]{0}', space=sflag, size = 0x8, scoped, tag = 'scoped memory for tpu_custom_call.1']
    #allocation4 [shape = 's32[2]{0}', space=sflag, size = 0x8, scoped, tag = 'scoped memory for tpu_custom_call.1']
    #allocation5 [shape = 'u8[16384]{0}', space=vmem, size = 0x4000, scoped, tag = 'input window, operand 1']
    #allocation6 [shape = 's32[2]{0}', space=sflag, size = 0x8, scoped, tag = 'scoped memory for tpu_custom_call.1']
    #allocation7 [shape = 'u8[16384]{0}', space=vmem, size = 0x4000, scoped, tag = 'input window, operand 2']
    #allocation8 [shape = 'u8[16384]{0}', space=vmem, size = 0x4000, scoped, tag = 'input window, operand 3']
    #allocation9 [shape = 's32[2]{0}', space=sflag, size = 0x8, scoped, tag = 'scoped memory for tpu_custom_call.1']
    #allocation10 [shape = 'u8[16384]{0}', space=vmem, size = 0x4000, scoped, tag = 'input window, operand 4']
    #allocation11 [shape = 'u8[65536]{0}', space=vmem, size = 0x10000, scoped, tag = 'input window, operand 8, single buffered']
    #allocation12 [shape = 's32[1]{0}', space=sflag, size = 0x4, scoped, tag = 'scoped memory for tpu_custom_call.1']
    #allocation13 [shape = 'u8[98304]{0}', space=vmem, size = 0x18000, scoped, tag = 'input window, operand 10, single buffered']
    #allocation14 [shape = 'u8[98304]{0}', space=vmem, size = 0x18000, scoped, tag = 'input window, operand 11, single buffered']
    #allocation15 [shape = 's32[1]{0}', space=sflag, size = 0x4, scoped, tag = 'scoped memory for tpu_custom_call.1']
    #allocation16 [shape = 'u8[65536]{0}', space=vmem, size = 0x10000, scoped, tag = 'input window, operand 13, single buffered']
    #allocation17 [shape = 'u8[32768]{0}', space=vmem, size = 0x8000, scoped, tag = 'input window, operand 14, single buffered']
    #allocation18 [shape = 's32[1]{0}', space=sflag, size = 0x4, scoped, tag = 'scoped memory for tpu_custom_call.1']
    #allocation19 [shape = 'u8[49152]{0}', space=vmem, size = 0xc000, scoped, tag = 'output window, operand 0']
    %20 = vsyncpa [#allocation3], 0
    %s21 = scalar_lea.sflag [#allocation3], 1
    %22 = vsyncpa %s21, 0
    %23 = vsyncpa [#allocation6], 0
    %s24 = scalar_lea.sflag [#allocation6], 1
    %25 = vsyncpa %s24, 0
    %26 = vsyncpa [#allocation9], 0
    %s27 = scalar_lea.sflag [#allocation9], 1
    %28 = vsyncpa %s27, 0
    %29 = vsyncpa [#allocation12], 0
    %30 = vsyncpa [#allocation15], 0
    %31 = vsyncpa [#allocation18], 0
    %32 = vsyncpa [#allocation4], 0
    %s33 = scalar_lea.sflag [#allocation4], 1
    %34 = vsyncpa %s33, 0
    loop: start=0, step=1, limit=4
    $region2: #{tpu_custom_call.1} parent=1 // loop_pre_header
      _
    $region3: #{tpu_custom_call.1} parent=1 // loop_header
      %s36 = sphi 0, %s40
      %p37 = scmp.ge.s32.totalorder %s36, 4
      %s46 = sphi 0, %s48
      %s49 = sphi 0, %s46
      %s50 = sphi 0, %s49
      %s66 = sphi 0, %s50
      %s72 = sphi 0, %s74
      %s75 = sphi 0, %s72
      %s76 = sphi 0, %s75
      %s92 = sphi 0, %s76
      %s98 = sphi 0, %s100
      %s101 = sphi 0, %s98
      %s102 = sphi 0, %s101
      %s118 = sphi 0, %s102
      %s124 = sphi 0, %s126
      %s127 = sphi 0, %s124
      %s128 = sphi 0, %s127
      %s144 = sphi 0, %s128
      %s150 = sphi 0, %s152
      %s153 = sphi 0, %s150
      %s154 = sphi 0, %s153
      %s170 = sphi 0, %s154
      %s174 = sphi 0, %s174
      %s176 = sphi 0, %s174
      %s177 = sphi 0, %s176
      %s191 = sphi 0, %s177
      %s195 = sphi 0, %s195
      %s197 = sphi 0, %s195
      %s198 = sphi 0, %s197
      %s212 = sphi 0, %s198
      %s216 = sphi 0, %s216
      %s218 = sphi 0, %s216
      %s219 = sphi 0, %s218
      %s233 = sphi 0, %s219
      %s237 = sphi 0, %s237
      %s239 = sphi 0, %s237
      %s240 = sphi 0, %s239
      %s254 = sphi 0, %s240
      %s258 = sphi 0, %s258
      %s260 = sphi 0, %s258
      %s261 = sphi 0, %s260
      %s275 = sphi 0, %s261
      %s279 = sphi 0, %s279
      %s281 = sphi 0, %s279
      %s282 = sphi 0, %s281
      %s296 = sphi 0, %s282
      %s300 = sphi 0, %s300
      %s302 = sphi 0, %s300
      %s303 = sphi 0, %s302
      %s317 = sphi 0, %s303
      %s321 = sphi 0, %s321
      %s323 = sphi 0, %s321
      %s324 = sphi 0, %s323
      %s338 = sphi 0, %s324
      %s342 = sphi 0, %s342
      %s344 = sphi 0, %s342
      %s345 = sphi 0, %s344
      %s359 = sphi 0, %s345
      %s363 = sphi 0, %s363
      %s365 = sphi 0, %s363
      %s366 = sphi 0, %s365
      %s380 = sphi 0, %s366
      %s386 = sphi 0, %s388
      %s389 = sphi 0, %s386
      %s390 = sphi 0, %s389
      %s406 = sphi 0, %s390
    $region4: #{tpu_custom_call.1} parent=1 // loop_header_branch
      %39 = sbr.rel (%p37) target = $region8
    $region5: #{tpu_custom_call.1} parent=1 // loop_body
      %s41 = ssub.s32 %s36, 1
      %s42 = ssub.s32 %s36, 2
      %s43 = sadd.s32 %s36, 1
      %s44 = ssub.s32 %s36, %s43
      %p45 = scmp.eq.s32.totalorder %s44, 0
      %s47 = sadd.s32 %s46, 1
      %s48 = scalar_select %p45, %s46, %s47
      %p51 = pneg %p45
      %p52 = scmp.eq.s32.totalorder %s36, 1
      %p53 = por %p51, %p52
      %p54 = scmp.ne.s32.totalorder %s46, %s49
      %p55 = scmp.eq.s32.totalorder %s36, 0
      %p56 = por %p54, %p55
      %p57 = scmp.ne.s32.totalorder %s46, %s49
      %p58 = scmp.eq.s32.totalorder %s41, 1
      %p59 = por %p57, %p58
      %p60 = scmp.ne.s32.totalorder %s49, %s50
      %p61 = scmp.eq.s32.totalorder %s41, 0
      %p62 = por %p60, %p61
      %p63 = scmp.ne.s32.totalorder %s49, %s50
      %p64 = scmp.eq.s32.totalorder %s42, 1
      %p65 = por %p63, %p64
      %p67 = scmp.ne.s32.totalorder %s50, %s66
      %p68 = scmp.eq.s32.totalorder %s42, 0
      %p69 = por %p67, %p68
      %s70 = ssub.s32 %s36, %s43
      %p71 = scmp.eq.s32.totalorder %s70, 0
      %s73 = sadd.s32 %s72, 1
      %s74 = scalar_select %p71, %s72, %s73
      %p77 = pneg %p71
      %p78 = scmp.eq.s32.totalorder %s36, 1
      %p79 = por %p77, %p78
      %p80 = scmp.ne.s32.totalorder %s72, %s75
      %p81 = scmp.eq.s32.totalorder %s36, 0
      %p82 = por %p80, %p81
      %p83 = scmp.ne.s32.totalorder %s72, %s75
      %p84 = scmp.eq.s32.totalorder %s41, 1
      %p85 = por %p83, %p84
      %p86 = scmp.ne.s32.totalorder %s75, %s76
      %p87 = scmp.eq.s32.totalorder %s41, 0
      %p88 = por %p86, %p87
      %p89 = scmp.ne.s32.totalorder %s75, %s76
      %p90 = scmp.eq.s32.totalorder %s42, 1
      %p91 = por %p89, %p90
      %p93 = scmp.ne.s32.totalorder %s76, %s92
      %p94 = scmp.eq.s32.totalorder %s42, 0
      %p95 = por %p93, %p94
      %s96 = ssub.s32 %s36, %s43
      %p97 = scmp.eq.s32.totalorder %s96, 0
      %s99 = sadd.s32 %s98, 1
      %s100 = scalar_select %p97, %s98, %s99
      %p103 = pneg %p97
      %p104 = scmp.eq.s32.totalorder %s36, 1
      %p105 = por %p103, %p104
      %p106 = scmp.ne.s32.totalorder %s98, %s101
      %p107 = scmp.eq.s32.totalorder %s36, 0
      %p108 = por %p106, %p107
      %p109 = scmp.ne.s32.totalorder %s98, %s101
      %p110 = scmp.eq.s32.totalorder %s41, 1
      %p111 = por %p109, %p110
      %p112 = scmp.ne.s32.totalorder %s101, %s102
      %p113 = scmp.eq.s32.totalorder %s41, 0
      %p114 = por %p112, %p113
      %p115 = scmp.ne.s32.totalorder %s101, %s102
      %p116 = scmp.eq.s32.totalorder %s42, 1
      %p117 = por %p115, %p116
      %p119 = scmp.ne.s32.totalorder %s102, %s118
      %p120 = scmp.eq.s32.totalorder %s42, 0
      %p121 = por %p119, %p120
      %s122 = ssub.s32 %s36, %s43
      %p123 = scmp.eq.s32.totalorder %s122, 0
      %s125 = sadd.s32 %s124, 1
      %s126 = scalar_select %p123, %s124, %s125
      %p129 = pneg %p123
      %p130 = scmp.eq.s32.totalorder %s36, 1
      %p131 = por %p129, %p130
      %p132 = scmp.ne.s32.totalorder %s124, %s127
      %p133 = scmp.eq.s32.totalorder %s36, 0
      %p134 = por %p132, %p133
      %p135 = scmp.ne.s32.totalorder %s124, %s127
      %p136 = scmp.eq.s32.totalorder %s41, 1
      %p137 = por %p135, %p136
      %p138 = scmp.ne.s32.totalorder %s127, %s128
      %p139 = scmp.eq.s32.totalorder %s41, 0
      %p140 = por %p138, %p139
      %p141 = scmp.ne.s32.totalorder %s127, %s128
      %p142 = scmp.eq.s32.totalorder %s42, 1
      %p143 = por %p141, %p142
      %p145 = scmp.ne.s32.totalorder %s128, %s144
      %p146 = scmp.eq.s32.totalorder %s42, 0
      %p147 = por %p145, %p146
      %s148 = ssub.s32 %s36, %s43
      %p149 = scmp.eq.s32.totalorder %s148, 0
      %s151 = sadd.s32 %s150, 1
      %s152 = scalar_select %p149, %s150, %s151
      %p155 = pneg %p149
      %p156 = scmp.eq.s32.totalorder %s36, 1
      %p157 = por %p155, %p156
      %p158 = scmp.ne.s32.totalorder %s150, %s153
      %p159 = scmp.eq.s32.totalorder %s36, 0
      %p160 = por %p158, %p159
      %p161 = scmp.ne.s32.totalorder %s150, %s153
      %p162 = scmp.eq.s32.totalorder %s41, 1
      %p163 = por %p161, %p162
      %p164 = scmp.ne.s32.totalorder %s153, %s154
      %p165 = scmp.eq.s32.totalorder %s41, 0
      %p166 = por %p164, %p165
      %p167 = scmp.ne.s32.totalorder %s153, %s154
      %p168 = scmp.eq.s32.totalorder %s42, 1
      %p169 = por %p167, %p168
      %p171 = scmp.ne.s32.totalorder %s154, %s170
      %p172 = scmp.eq.s32.totalorder %s42, 0
      %p173 = por %p171, %p172
      %s175 = sadd.s32 %s174, 1
      %p178 = scmp.eq.s32.totalorder %s36, 1
      %p179 = scmp.ne.s32.totalorder %s174, %s176
      %p180 = scmp.eq.s32.totalorder %s36, 0
      %p181 = por %p179, %p180
      %p182 = scmp.ne.s32.totalorder %s174, %s176
      %p183 = scmp.eq.s32.totalorder %s41, 1
      %p184 = por %p182, %p183
      %p185 = scmp.ne.s32.totalorder %s176, %s177
      %p186 = scmp.eq.s32.totalorder %s41, 0
      %p187 = por %p185, %p186
      %p188 = scmp.ne.s32.totalorder %s176, %s177
      %p189 = scmp.eq.s32.totalorder %s42, 1
      %p190 = por %p188, %p189
      %p192 = scmp.ne.s32.totalorder %s177, %s191
      %p193 = scmp.eq.s32.totalorder %s42, 0
      %p194 = por %p192, %p193
      %s196 = sadd.s32 %s195, 1
      %p199 = scmp.eq.s32.totalorder %s36, 1
      %p200 = scmp.ne.s32.totalorder %s195, %s197
      %p201 = scmp.eq.s32.totalorder %s36, 0
      %p202 = por %p200, %p201
      %p203 = scmp.ne.s32.totalorder %s195, %s197
      %p204 = scmp.eq.s32.totalorder %s41, 1
      %p205 = por %p203, %p204
      %p206 = scmp.ne.s32.totalorder %s197, %s198
      %p207 = scmp.eq.s32.totalorder %s41, 0
      %p208 = por %p206, %p207
      %p209 = scmp.ne.s32.totalorder %s197, %s198
      %p210 = scmp.eq.s32.totalorder %s42, 1
      %p211 = por %p209, %p210
      %p213 = scmp.ne.s32.totalorder %s198, %s212
      %p214 = scmp.eq.s32.totalorder %s42, 0
      %p215 = por %p213, %p214
      %s217 = sadd.s32 %s216, 1
      %p220 = scmp.eq.s32.totalorder %s36, 1
      %p221 = scmp.ne.s32.totalorder %s216, %s218
      %p222 = scmp.eq.s32.totalorder %s36, 0
      %p223 = por %p221, %p222
      %p224 = scmp.ne.s32.totalorder %s216, %s218
      %p225 = scmp.eq.s32.totalorder %s41, 1
      %p226 = por %p224, %p225
      %p227 = scmp.ne.s32.totalorder %s218, %s219
      %p228 = scmp.eq.s32.totalorder %s41, 0
      %p229 = por %p227, %p228
      %p230 = scmp.ne.s32.totalorder %s218, %s219
      %p231 = scmp.eq.s32.totalorder %s42, 1
      %p232 = por %p230, %p231
      %p234 = scmp.ne.s32.totalorder %s219, %s233
      %p235 = scmp.eq.s32.totalorder %s42, 0
      %p236 = por %p234, %p235
      %s238 = sadd.s32 %s237, 1
      %p241 = scmp.eq.s32.totalorder %s36, 1
      %p242 = scmp.ne.s32.totalorder %s237, %s239
      %p243 = scmp.eq.s32.totalorder %s36, 0
      %p244 = por %p242, %p243
      %p245 = scmp.ne.s32.totalorder %s237, %s239
      %p246 = scmp.eq.s32.totalorder %s41, 1
      %p247 = por %p245, %p246
      %p248 = scmp.ne.s32.totalorder %s239, %s240
      %p249 = scmp.eq.s32.totalorder %s41, 0
      %p250 = por %p248, %p249
      %p251 = scmp.ne.s32.totalorder %s239, %s240
      %p252 = scmp.eq.s32.totalorder %s42, 1
      %p253 = por %p251, %p252
      %p255 = scmp.ne.s32.totalorder %s240, %s254
      %p256 = scmp.eq.s32.totalorder %s42, 0
      %p257 = por %p255, %p256
      %s259 = sadd.s32 %s258, 1
      %p262 = scmp.eq.s32.totalorder %s36, 1
      %p263 = scmp.ne.s32.totalorder %s258, %s260
      %p264 = scmp.eq.s32.totalorder %s36, 0
      %p265 = por %p263, %p264
      %p266 = scmp.ne.s32.totalorder %s258, %s260
      %p267 = scmp.eq.s32.totalorder %s41, 1
      %p268 = por %p266, %p267
      %p269 = scmp.ne.s32.totalorder %s260, %s261
      %p270 = scmp.eq.s32.totalorder %s41, 0
      %p271 = por %p269, %p270
      %p272 = scmp.ne.s32.totalorder %s260, %s261
      %p273 = scmp.eq.s32.totalorder %s42, 1
      %p274 = por %p272, %p273
      %p276 = scmp.ne.s32.totalorder %s261, %s275
      %p277 = scmp.eq.s32.totalorder %s42, 0
      %p278 = por %p276, %p277
      %s280 = sadd.s32 %s279, 1
      %p283 = scmp.eq.s32.totalorder %s36, 1
      %p284 = scmp.ne.s32.totalorder %s279, %s281
      %p285 = scmp.eq.s32.totalorder %s36, 0
      %p286 = por %p284, %p285
      %p287 = scmp.ne.s32.totalorder %s279, %s281
      %p288 = scmp.eq.s32.totalorder %s41, 1
      %p289 = por %p287, %p288
      %p290 = scmp.ne.s32.totalorder %s281, %s282
      %p291 = scmp.eq.s32.totalorder %s41, 0
      %p292 = por %p290, %p291
      %p293 = scmp.ne.s32.totalorder %s281, %s282
      %p294 = scmp.eq.s32.totalorder %s42, 1
      %p295 = por %p293, %p294
      %p297 = scmp.ne.s32.totalorder %s282, %s296
      %p298 = scmp.eq.s32.totalorder %s42, 0
      %p299 = por %p297, %p298
      %s301 = sadd.s32 %s300, 1
      %p304 = scmp.eq.s32.totalorder %s36, 1
      %p305 = scmp.ne.s32.totalorder %s300, %s302
      %p306 = scmp.eq.s32.totalorder %s36, 0
      %p307 = por %p305, %p306
      %p308 = scmp.ne.s32.totalorder %s300, %s302
      %p309 = scmp.eq.s32.totalorder %s41, 1
      %p310 = por %p308, %p309
      %p311 = scmp.ne.s32.totalorder %s302, %s303
      %p312 = scmp.eq.s32.totalorder %s41, 0
      %p313 = por %p311, %p312
      %p314 = scmp.ne.s32.totalorder %s302, %s303
      %p315 = scmp.eq.s32.totalorder %s42, 1
      %p316 = por %p314, %p315
      %p318 = scmp.ne.s32.totalorder %s303, %s317
      %p319 = scmp.eq.s32.totalorder %s42, 0
      %p320 = por %p318, %p319
      %s322 = sadd.s32 %s321, 1
      %p325 = scmp.eq.s32.totalorder %s36, 1
      %p326 = scmp.ne.s32.totalorder %s321, %s323
      %p327 = scmp.eq.s32.totalorder %s36, 0
      %p328 = por %p326, %p327
      %p329 = scmp.ne.s32.totalorder %s321, %s323
      %p330 = scmp.eq.s32.totalorder %s41, 1
      %p331 = por %p329, %p330
      %p332 = scmp.ne.s32.totalorder %s323, %s324
      %p333 = scmp.eq.s32.totalorder %s41, 0
      %p334 = por %p332, %p333
      %p335 = scmp.ne.s32.totalorder %s323, %s324
      %p336 = scmp.eq.s32.totalorder %s42, 1
      %p337 = por %p335, %p336
      %p339 = scmp.ne.s32.totalorder %s324, %s338
      %p340 = scmp.eq.s32.totalorder %s42, 0
      %p341 = por %p339, %p340
      %s343 = sadd.s32 %s342, 1
      %p346 = scmp.eq.s32.totalorder %s36, 1
      %p347 = scmp.ne.s32.totalorder %s342, %s344
      %p348 = scmp.eq.s32.totalorder %s36, 0
      %p349 = por %p347, %p348
      %p350 = scmp.ne.s32.totalorder %s342, %s344
      %p351 = scmp.eq.s32.totalorder %s41, 1
      %p352 = por %p350, %p351
      %p353 = scmp.ne.s32.totalorder %s344, %s345
      %p354 = scmp.eq.s32.totalorder %s41, 0
      %p355 = por %p353, %p354
      %p356 = scmp.ne.s32.totalorder %s344, %s345
      %p357 = scmp.eq.s32.totalorder %s42, 1
      %p358 = por %p356, %p357
      %p360 = scmp.ne.s32.totalorder %s345, %s359
      %p361 = scmp.eq.s32.totalorder %s42, 0
      %p362 = por %p360, %p361
      %s364 = sadd.s32 %s363, 1
      %p367 = scmp.eq.s32.totalorder %s36, 1
      %p368 = scmp.ne.s32.totalorder %s363, %s365
      %p369 = scmp.eq.s32.totalorder %s36, 0
      %p370 = por %p368, %p369
      %p371 = scmp.ne.s32.totalorder %s363, %s365
      %p372 = scmp.eq.s32.totalorder %s41, 1
      %p373 = por %p371, %p372
      %p374 = scmp.ne.s32.totalorder %s365, %s366
      %p375 = scmp.eq.s32.totalorder %s41, 0
      %p376 = por %p374, %p375
      %p377 = scmp.ne.s32.totalorder %s365, %s366
      %p378 = scmp.eq.s32.totalorder %s42, 1
      %p379 = por %p377, %p378
      %p381 = scmp.ne.s32.totalorder %s366, %s380
      %p382 = scmp.eq.s32.totalorder %s42, 0
      %p383 = por %p381, %p382
      %s384 = ssub.s32 %s36, %s43
      %p385 = scmp.eq.s32.totalorder %s384, 0
      %s387 = sadd.s32 %s386, 1
      %s388 = scalar_select %p385, %s386, %s387
      %p391 = pneg %p385
      %p392 = scmp.eq.s32.totalorder %s36, 1
      %p393 = por %p391, %p392
      %p394 = scmp.ne.s32.totalorder %s386, %s389
      %p395 = scmp.eq.s32.totalorder %s36, 0
      %p396 = por %p394, %p395
      %p397 = scmp.ne.s32.totalorder %s386, %s389
      %p398 = scmp.eq.s32.totalorder %s41, 1
      %p399 = por %p397, %p398
      %p400 = scmp.ne.s32.totalorder %s389, %s390
      %p401 = scmp.eq.s32.totalorder %s41, 0
      %p402 = por %p400, %p401
      %p403 = scmp.ne.s32.totalorder %s389, %s390
      %p404 = scmp.eq.s32.totalorder %s42, 1
      %p405 = por %p403, %p404
      %p407 = scmp.ne.s32.totalorder %s390, %s406
      %p408 = scmp.eq.s32.totalorder %s42, 0
      %p409 = por %p407, %p408
      %p410 = scmp.le.s32.totalorder 1, %s36
      %p411 = scmp.lt.s32.totalorder %s36, 3
      %p412 = pnand %p410, %p411
      %p413 = pneg %p412
      // Predicated region
      $region9: #{tpu_custom_call.1} parent=5 // pred_check
        _
      $region10: #{tpu_custom_call.1} parent=5 // pred_check_branch
        %415 = sbr.rel (%p412) target = $region12
      $region11: #{tpu_custom_call.1} parent=5 // pred_region
        %s416 = ssub.s32 %s36, 1
        // Predicated region
        $region13: #{tpu_custom_call.1} parent=11 // pred_check
          %p417 = pneg %p187
        $region14: #{tpu_custom_call.1} parent=11 // pred_check_branch
          %419 = sbr.rel (%p417) target = $region16
        $region15: #{tpu_custom_call.1} parent=11 // pred_region
          _
        $region16: #{tpu_custom_call.1} parent=11 // pred_fallthru
          _
        // Predicated region
        $region17: #{tpu_custom_call.1} parent=11 // pred_check
          %p420 = pneg %p208
        $region18: #{tpu_custom_call.1} parent=11 // pred_check_branch
          %422 = sbr.rel (%p420) target = $region20
        $region19: #{tpu_custom_call.1} parent=11 // pred_region
          _
        $region20: #{tpu_custom_call.1} parent=11 // pred_fallthru
          _
        // Predicated region
        $region21: #{tpu_custom_call.1} parent=11 // pred_check
          %p423 = pneg %p229
        $region22: #{tpu_custom_call.1} parent=11 // pred_check_branch
          %425 = sbr.rel (%p423) target = $region24
        $region23: #{tpu_custom_call.1} parent=11 // pred_region
          _
        $region24: #{tpu_custom_call.1} parent=11 // pred_fallthru
          _
        // Predicated region
        $region25: #{tpu_custom_call.1} parent=11 // pred_check
          %p426 = pneg %p250
        $region26: #{tpu_custom_call.1} parent=11 // pred_check_branch
          %428 = sbr.rel (%p426) target = $region28
        $region27: #{tpu_custom_call.1} parent=11 // pred_region
          %s430 = ssub.s32 2048, 2048
          %431 = vsyncadd [#allocation12], %s430
          %s432 = sshll.u32 [#allocation11], 4
          %s433 = int_to_ptr.vmem [resolvable:$true] %s432
          %438 = dma.hbm_to_vmem [thread:$0]  %s8, 2048, %s433, [#allocation12], 128, 128, 8
        $region28: #{tpu_custom_call.1} parent=11 // pred_fallthru
          _
        // Predicated region
        $region29: #{tpu_custom_call.1} parent=11 // pred_check
          %p439 = pneg %p271
        $region30: #{tpu_custom_call.1} parent=11 // pred_check_branch
          %441 = sbr.rel (%p439) target = $region32
        $region31: #{tpu_custom_call.1} parent=11 // pred_region
          _
        $region32: #{tpu_custom_call.1} parent=11 // pred_fallthru
          _
        // Predicated region
        $region33: #{tpu_custom_call.1} parent=11 // pred_check
          %p442 = pneg %p292
        $region34: #{tpu_custom_call.1} parent=11 // pred_check_branch
          %444 = sbr.rel (%p442) target = $region36
        $region35: #{tpu_custom_call.1} parent=11 // pred_region
          %s446 = ssub.s32 3072, 3072
          %447 = vsyncadd [#allocation12], %s446
          %s448 = sshll.u32 [#allocation13], 4
          %s449 = int_to_ptr.vmem [resolvable:$true] %s448
          %454 = dma.hbm_to_vmem [thread:$0]  %s10, 3072, %s449, [#allocation12], 192, 192, 12
        $region36: #{tpu_custom_call.1} parent=11 // pred_fallthru
          _
        // Predicated region
        $region37: #{tpu_custom_call.1} parent=11 // pred_check
          %p455 = pneg %p313
        $region38: #{tpu_custom_call.1} parent=11 // pred_check_branch
          %457 = sbr.rel (%p455) target = $region40
        $region39: #{tpu_custom_call.1} parent=11 // pred_region
          %s459 = ssub.s32 3072, 3072
          %460 = vsyncadd [#allocation15], %s459
          %s461 = sshll.u32 [#allocation14], 4
          %s462 = int_to_ptr.vmem [resolvable:$true] %s461
          %467 = dma.hbm_to_vmem [thread:$0]  %s11, 3072, %s462, [#allocation15], 192, 192, 12
        $region40: #{tpu_custom_call.1} parent=11 // pred_fallthru
          _
        // Predicated region
        $region41: #{tpu_custom_call.1} parent=11 // pred_check
          %p468 = pneg %p334
        $region42: #{tpu_custom_call.1} parent=11 // pred_check_branch
          %470 = sbr.rel (%p468) target = $region44
        $region43: #{tpu_custom_call.1} parent=11 // pred_region
          _
        $region44: #{tpu_custom_call.1} parent=11 // pred_fallthru
          _
        // Predicated region
        $region45: #{tpu_custom_call.1} parent=11 // pred_check
          %p471 = pneg %p355
        $region46: #{tpu_custom_call.1} parent=11 // pred_check_branch
          %473 = sbr.rel (%p471) target = $region48
        $region47: #{tpu_custom_call.1} parent=11 // pred_region
          %s475 = ssub.s32 2048, 2048
          %476 = vsyncadd [#allocation15], %s475
          %s477 = sshll.u32 [#allocation16], 4
          %s478 = int_to_ptr.vmem [resolvable:$true] %s477
          %483 = dma.hbm_to_vmem [thread:$0]  %s13, 2048, %s478, [#allocation15], 128, 128, 8
        $region48: #{tpu_custom_call.1} parent=11 // pred_fallthru
          _
        // Predicated region
        $region49: #{tpu_custom_call.1} parent=11 // pred_check
          %p484 = pneg %p376
        $region50: #{tpu_custom_call.1} parent=11 // pred_check_branch
          %486 = sbr.rel (%p484) target = $region52
        $region51: #{tpu_custom_call.1} parent=11 // pred_region
          %s488 = ssub.s32 1024, 1024
          %489 = vsyncadd [#allocation18], %s488
          %s490 = sshll.u32 [#allocation17], 4
          %s491 = int_to_ptr.vmem [resolvable:$true] %s490
          %496 = dma.hbm_to_vmem [thread:$0]  %s14, 1024, %s491, [#allocation18], 64, 64, 4
        $region52: #{tpu_custom_call.1} parent=11 // pred_fallthru
          _
      $region12: #{tpu_custom_call.1} parent=5 // pred_fallthru
        _
      %p497 = scmp.lt.s32.totalorder %s36, 2
      // Predicated region
      $region53: #{tpu_custom_call.1} parent=5 // pred_check
        %p498 = pneg %p497
      $region54: #{tpu_custom_call.1} parent=5 // pred_check_branch
        %500 = sbr.rel (%p498) target = $region56
      $region55: #{tpu_custom_call.1} parent=5 // pred_region
        // Predicated region
        $region57: #{tpu_custom_call.1} parent=55 // pred_check
          %p501 = pneg %p56
        $region58: #{tpu_custom_call.1} parent=55 // pred_check_branch
          %503 = sbr.rel (%p501) target = $region60
        $region59: #{tpu_custom_call.1} parent=55 // pred_region
          %s504 = sand.u32 %s46, 1
          %s505 = scalar_lea.sflag [#allocation3], %s504
          %s506 = sand.u32 %s46, 1
          %s507 = smul.addr %s506, 16
          %s508 = scalar_lea.vmem [#allocation2], %s507
          %s509 = smul.u32 2, %s36
          %s511 = ssub.s32 256, 256
          %512 = vsyncadd %s505, %s511
          %s513 = smul.addr %s509, 128
          %s514 = scalar_lea.hbm %s0, %s513
          %s515 = sshll.u32 %s508, 4
          %s516 = int_to_ptr.vmem [resolvable:$true] %s515
          %521 = dma.hbm_to_vmem [thread:$0]  %s514, 256, %s516, %s505, 128, 128, 8
        $region60: #{tpu_custom_call.1} parent=55 // pred_fallthru
          _
        // Predicated region
        $region61: #{tpu_custom_call.1} parent=55 // pred_check
          %p522 = pneg %p82
        $region62: #{tpu_custom_call.1} parent=55 // pred_check_branch
          %524 = sbr.rel (%p522) target = $region64
        $region63: #{tpu_custom_call.1} parent=55 // pred_region
          %s525 = sand.u32 %s36, 1
          %s526 = scalar_lea.sflag [#allocation6], %s525
          %s527 = sand.u32 %s72, 1
          %s528 = smul.addr %s527, 16
          %s529 = scalar_lea.vmem [#allocation5], %s528
          %s530 = smul.u32 2, %s36
          %s532 = ssub.s32 256, 256
          %533 = vsyncadd %s526, %s532
          %s534 = smul.addr %s530, 128
          %s535 = scalar_lea.hbm %s1, %s534
          %s536 = sshll.u32 %s529, 4
          %s537 = int_to_ptr.vmem [resolvable:$true] %s536
          %542 = dma.hbm_to_vmem [thread:$0]  %s535, 256, %s537, %s526, 128, 128, 8
        $region64: #{tpu_custom_call.1} parent=55 // pred_fallthru
          _
        // Predicated region
        $region65: #{tpu_custom_call.1} parent=55 // pred_check
          %p543 = pneg %p108
        $region66: #{tpu_custom_call.1} parent=55 // pred_check_branch
          %545 = sbr.rel (%p543) target = $region68
        $region67: #{tpu_custom_call.1} parent=55 // pred_region
          %s546 = sand.u32 %s36, 1
          %s547 = scalar_lea.sflag [#allocation6], %s546
          %s548 = sand.u32 %s98, 1
          %s549 = smul.addr %s548, 16
          %s550 = scalar_lea.vmem [#allocation7], %s549
          %s551 = smul.u32 2, %s36
          %s553 = ssub.s32 256, 256
          %554 = vsyncadd %s547, %s553
          %s555 = smul.addr %s551, 128
          %s556 = scalar_lea.hbm %s2, %s555
          %s557 = sshll.u32 %s550, 4
          %s558 = int_to_ptr.vmem [resolvable:$true] %s557
          %563 = dma.hbm_to_vmem [thread:$0]  %s556, 256, %s558, %s547, 128, 128, 8
        $region68: #{tpu_custom_call.1} parent=55 // pred_fallthru
          _
        // Predicated region
        $region69: #{tpu_custom_call.1} parent=55 // pred_check
          %p564 = pneg %p134
        $region70: #{tpu_custom_call.1} parent=55 // pred_check_branch
          %566 = sbr.rel (%p564) target = $region72
        $region71: #{tpu_custom_call.1} parent=55 // pred_region
          %s567 = sand.u32 %s36, 1
          %s568 = scalar_lea.sflag [#allocation9], %s567
          %s569 = sand.u32 %s124, 1
          %s570 = smul.addr %s569, 16
          %s571 = scalar_lea.vmem [#allocation8], %s570
          %s572 = smul.u32 2, %s36
          %s574 = ssub.s32 256, 256
          %575 = vsyncadd %s568, %s574
          %s576 = smul.addr %s572, 128
          %s577 = scalar_lea.hbm %s3, %s576
          %s578 = sshll.u32 %s571, 4
          %s579 = int_to_ptr.vmem [resolvable:$true] %s578
          %584 = dma.hbm_to_vmem [thread:$0]  %s577, 256, %s579, %s568, 128, 128, 8
        $region72: #{tpu_custom_call.1} parent=55 // pred_fallthru
          _
        // Predicated region
        $region73: #{tpu_custom_call.1} parent=55 // pred_check
          %p585 = pneg %p160
        $region74: #{tpu_custom_call.1} parent=55 // pred_check_branch
          %587 = sbr.rel (%p585) target = $region76
        $region75: #{tpu_custom_call.1} parent=55 // pred_region
          %s588 = sand.u32 %s36, 1
          %s589 = scalar_lea.sflag [#allocation9], %s588
          %s590 = sand.u32 %s150, 1
          %s591 = smul.addr %s590, 16
          %s592 = scalar_lea.vmem [#allocation10], %s591
          %s593 = smul.u32 2, %s36
          %s595 = ssub.s32 256, 256
          %596 = vsyncadd %s589, %s595
          %s597 = smul.addr %s593, 128
          %s598 = scalar_lea.hbm %s4, %s597
          %s599 = sshll.u32 %s592, 4
          %s600 = int_to_ptr.vmem [resolvable:$true] %s599
          %605 = dma.hbm_to_vmem [thread:$0]  %s598, 256, %s600, %s589, 128, 128, 8
        $region76: #{tpu_custom_call.1} parent=55 // pred_fallthru
          _
      $region56: #{tpu_custom_call.1} parent=5 // pred_fallthru
        _
      %p606 = scmp.le.s32.totalorder 1, %s36
      %p607 = scmp.lt.s32.totalorder %s36, 3
      %p608 = pnand %p606, %p607
      %p609 = pneg %p608
      // Predicated region
      $region77: #{tpu_custom_call.1} parent=5 // pred_check
        _
      $region78: #{tpu_custom_call.1} parent=5 // pred_check_branch
        %611 = sbr.rel (%p608) target = $region80
      $region79: #{tpu_custom_call.1} parent=5 // pred_region
        %s612 = ssub.s32 %s36, 1
        %s613 = sand.u32 %s49, 1
        %s614 = scalar_lea.sflag [#allocation3], %s613
        %s615 = sand.u32 %s49, 1
        %s616 = smul.addr %s615, 16
        %s617 = scalar_lea.vmem [#allocation2], %s616
        // Predicated region
        $region81: #{tpu_custom_call.1} parent=79 // pred_check
          %p618 = pneg %p62
        $region82: #{tpu_custom_call.1} parent=79 // pred_check_branch
          %620 = sbr.rel (%p618) target = $region84
        $region83: #{tpu_custom_call.1} parent=79 // pred_region
          %621 = dma.done %s614, 256
        $region84: #{tpu_custom_call.1} parent=79 // pred_fallthru
          _
        %s622 = sand.u32 %s41, 1
        %s623 = scalar_lea.sflag [#allocation6], %s622
        %s624 = sand.u32 %s75, 1
        %s625 = smul.addr %s624, 16
        %s626 = scalar_lea.vmem [#allocation5], %s625
        // Predicated region
        $region85: #{tpu_custom_call.1} parent=79 // pred_check
          %p627 = pneg %p88
        $region86: #{tpu_custom_call.1} parent=79 // pred_check_branch
          %629 = sbr.rel (%p627) target = $region88
        $region87: #{tpu_custom_call.1} parent=79 // pred_region
          %630 = dma.done %s623, 256
        $region88: #{tpu_custom_call.1} parent=79 // pred_fallthru
          _
        %s631 = sand.u32 %s41, 1
        %s632 = scalar_lea.sflag [#allocation6], %s631
        %s633 = sand.u32 %s101, 1
        %s634 = smul.addr %s633, 16
        %s635 = scalar_lea.vmem [#allocation7], %s634
        // Predicated region
        $region89: #{tpu_custom_call.1} parent=79 // pred_check
          %p636 = pneg %p114
        $region90: #{tpu_custom_call.1} parent=79 // pred_check_branch
          %638 = sbr.rel (%p636) target = $region92
        $region91: #{tpu_custom_call.1} parent=79 // pred_region
          %639 = dma.done %s632, 256
        $region92: #{tpu_custom_call.1} parent=79 // pred_fallthru
          _
        %s640 = sand.u32 %s41, 1
        %s641 = scalar_lea.sflag [#allocation9], %s640
        %s642 = sand.u32 %s127, 1
        %s643 = smul.addr %s642, 16
        %s644 = scalar_lea.vmem [#allocation8], %s643
        // Predicated region
        $region93: #{tpu_custom_call.1} parent=79 // pred_check
          %p645 = pneg %p140
        $region94: #{tpu_custom_call.1} parent=79 // pred_check_branch
          %647 = sbr.rel (%p645) target = $region96
        $region95: #{tpu_custom_call.1} parent=79 // pred_region
          %648 = dma.done %s641, 256
        $region96: #{tpu_custom_call.1} parent=79 // pred_fallthru
          _
        %s649 = sand.u32 %s41, 1
        %s650 = scalar_lea.sflag [#allocation9], %s649
        %s651 = sand.u32 %s153, 1
        %s652 = smul.addr %s651, 16
        %s653 = scalar_lea.vmem [#allocation10], %s652
        // Predicated region
        $region97: #{tpu_custom_call.1} parent=79 // pred_check
          %p654 = pneg %p166
        $region98: #{tpu_custom_call.1} parent=79 // pred_check_branch
          %656 = sbr.rel (%p654) target = $region100
        $region99: #{tpu_custom_call.1} parent=79 // pred_region
          %657 = dma.done %s650, 256
        $region100: #{tpu_custom_call.1} parent=79 // pred_fallthru
          _
        // Predicated region
        $region101: #{tpu_custom_call.1} parent=79 // pred_check
          %p658 = pneg %p250
        $region102: #{tpu_custom_call.1} parent=79 // pred_check_branch
          %660 = sbr.rel (%p658) target = $region104
        $region103: #{tpu_custom_call.1} parent=79 // pred_region
          %661 = dma.done [#allocation12], 2048
        $region104: #{tpu_custom_call.1} parent=79 // pred_fallthru
          _
        // Predicated region
        $region105: #{tpu_custom_call.1} parent=79 // pred_check
          %p662 = pneg %p292
        $region106: #{tpu_custom_call.1} parent=79 // pred_check_branch
          %664 = sbr.rel (%p662) target = $region108
        $region107: #{tpu_custom_call.1} parent=79 // pred_region
          %665 = dma.done [#allocation12], 3072
        $region108: #{tpu_custom_call.1} parent=79 // pred_fallthru
          _
        // Predicated region
        $region109: #{tpu_custom_call.1} parent=79 // pred_check
          %p666 = pneg %p313
        $region110: #{tpu_custom_call.1} parent=79 // pred_check_branch
          %668 = sbr.rel (%p666) target = $region112
        $region111: #{tpu_custom_call.1} parent=79 // pred_region
          %669 = dma.done [#allocation15], 3072
        $region112: #{tpu_custom_call.1} parent=79 // pred_fallthru
          _
        // Predicated region
        $region113: #{tpu_custom_call.1} parent=79 // pred_check
          %p670 = pneg %p355
        $region114: #{tpu_custom_call.1} parent=79 // pred_check_branch
          %672 = sbr.rel (%p670) target = $region116
        $region115: #{tpu_custom_call.1} parent=79 // pred_region
          %673 = dma.done [#allocation15], 2048
        $region116: #{tpu_custom_call.1} parent=79 // pred_fallthru
          _
        // Predicated region
        $region117: #{tpu_custom_call.1} parent=79 // pred_check
          %p674 = pneg %p376
        $region118: #{tpu_custom_call.1} parent=79 // pred_check_branch
          %676 = sbr.rel (%p674) target = $region120
        $region119: #{tpu_custom_call.1} parent=79 // pred_region
          %677 = dma.done [#allocation18], 1024
        $region120: #{tpu_custom_call.1} parent=79 // pred_fallthru
          _
        %s678 = sand.u32 %s49, 1
        %s679 = scalar_lea.sflag [#allocation3], %s678
        %s680 = sand.u32 %s49, 1
        %s681 = smul.addr %s680, 16
        %s682 = scalar_lea.vmem [#allocation2], %s681
        %p683 = pneg %p62
        %p684 = pneg %p59
        %s685 = sand.u32 %s41, 1
        %s686 = scalar_lea.sflag [#allocation6], %s685
        %s687 = sand.u32 %s75, 1
        %s688 = smul.addr %s687, 16
        %s689 = scalar_lea.vmem [#allocation5], %s688
        %p690 = pneg %p88
        %p691 = pneg %p85
        %s692 = sand.u32 %s41, 1
        %s693 = scalar_lea.sflag [#allocation6], %s692
        %s694 = sand.u32 %s101, 1
        %s695 = smul.addr %s694, 16
        %s696 = scalar_lea.vmem [#allocation7], %s695
        %p697 = pneg %p114
        %p698 = pneg %p111
        %s699 = sand.u32 %s41, 1
        %s700 = scalar_lea.sflag [#allocation9], %s699
        %s701 = sand.u32 %s127, 1
        %s702 = smul.addr %s701, 16
        %s703 = scalar_lea.vmem [#allocation8], %s702
        %p704 = pneg %p140
        %p705 = pneg %p137
        %s706 = sand.u32 %s41, 1
        %s707 = scalar_lea.sflag [#allocation9], %s706
        %s708 = sand.u32 %s153, 1
        %s709 = smul.addr %s708, 16
        %s710 = scalar_lea.vmem [#allocation10], %s709
        %p711 = pneg %p166
        %p712 = pneg %p163
        %p713 = pneg %p187
        %p714 = pneg %p184
        %p715 = pneg %p208
        %p716 = pneg %p205
        %p717 = pneg %p229
        %p718 = pneg %p226
        %p719 = pneg %p250
        %p720 = pneg %p247
        %p721 = pneg %p271
        %p722 = pneg %p268
        %p723 = pneg %p292
        %p724 = pneg %p289
        %p725 = pneg %p313
        %p726 = pneg %p310
        %p727 = pneg %p334
        %p728 = pneg %p331
        %p729 = pneg %p355
        %p730 = pneg %p352
        %p731 = pneg %p376
        %p732 = pneg %p373
        %p733 = pneg %p402
        %p734 = pneg %p399
        %s735 = sand.u32 %s389, 1
        %s736 = scalar_lea.sflag [#allocation4], %s735
        %s737 = sand.u32 %s389, 1
        %s738 = smul.addr %s737, 48
        %s739 = scalar_lea.vmem [#allocation19], %s738
        %s740 = smul.u32 2, %s41
        %s741 = smul.u32 2, %s41
        %s742 = smul.u32 2, %s41
        %s743 = smul.u32 2, %s41
        %s744 = smul.u32 2, %s41
        %s745 = smul.u32 2, %s41
        %v747 = vld [vmem:[%s617] sm:$0xff]
        %v748 = vld [vmem:[%s617 + $0x8] sm:$0xff]
        %v749 = vld [vmem:[%s626] sm:$0xff]
        %v750 = vld [vmem:[%s626 + $0x8] sm:$0xff]
        %v751 = vld [vmem:[%s635] sm:$0xff]
        %v752 = vld [vmem:[%s635 + $0x8] sm:$0xff]
        %v753 = vld [vmem:[%s644] sm:$0xff]
        %v754 = vld [vmem:[%s644 + $0x8] sm:$0xff]
        %v755 = vld [vmem:[%s653] sm:$0xff]
        %v756 = vld [vmem:[%s653 + $0x8] sm:$0xff]
        %v757 = vld [vmem:[%s5] sm:$0x1]
        %v758 = vld [vmem:[%s6] sm:$0x1]
        %v759 = vld [vmem:[%s7] sm:$0x1]
        %v760 = vld [vmem:[#allocation11] sm:$0xff]
        %v761 = vld [vmem:[#allocation11 + $0x8] sm:$0xff]
        %v762 = vld [vmem:[#allocation11 + $0x10] sm:$0xff]
        %v763 = vld [vmem:[#allocation11 + $0x18] sm:$0xff]
        %v764 = vld [vmem:[#allocation11 + $0x20] sm:$0xff]
        %v765 = vld [vmem:[#allocation11 + $0x28] sm:$0xff]
        %v766 = vld [vmem:[#allocation11 + $0x30] sm:$0xff]
        %v767 = vld [vmem:[#allocation11 + $0x38] sm:$0xff]
        %v768 = vld [vmem:[#allocation11 + $0x40] sm:$0xff]
        %v769 = vld [vmem:[#allocation11 + $0x48] sm:$0xff]
        %v770 = vld [vmem:[#allocation11 + $0x50] sm:$0xff]
        %v771 = vld [vmem:[#allocation11 + $0x58] sm:$0xff]
        %v772 = vld [vmem:[#allocation11 + $0x60] sm:$0xff]
        %v773 = vld [vmem:[#allocation11 + $0x68] sm:$0xff]
        %v774 = vld [vmem:[#allocation11 + $0x70] sm:$0xff]
        %v775 = vld [vmem:[#allocation11 + $0x78] sm:$0xff]
        %v776 = vld [vmem:[%s9] sm:$0x1]
        %v777 = vld [vmem:[#allocation13] sm:$0xff]
        %v778 = vld [vmem:[#allocation13 + $0x8] sm:$0xf]
        %v779 = vld [vmem:[#allocation13 + $0xc] sm:$0xff]
        %v780 = vld [vmem:[#allocation13 + $0x14] sm:$0xf]
        %v781 = vld [vmem:[#allocation13 + $0x18] sm:$0xff]
        %v782 = vld [vmem:[#allocation13 + $0x20] sm:$0xf]
        %v783 = vld [vmem:[#allocation13 + $0x24] sm:$0xff]
        %v784 = vld [vmem:[#allocation13 + $0x2c] sm:$0xf]
        %v785 = vld [vmem:[#allocation13 + $0x30] sm:$0xff]
        %v786 = vld [vmem:[#allocation13 + $0x38] sm:$0xf]
        %v787 = vld [vmem:[#allocation13 + $0x3c] sm:$0xff]
        %v788 = vld [vmem:[#allocation13 + $0x44] sm:$0xf]
        %v789 = vld [vmem:[#allocation13 + $0x48] sm:$0xff]
        %v790 = vld [vmem:[#allocation13 + $0x50] sm:$0xf]
        %v791 = vld [vmem:[#allocation13 + $0x54] sm:$0xff]
        %v792 = vld [vmem:[#allocation13 + $0x5c] sm:$0xf]
        %v793 = vld [vmem:[#allocation13 + $0x60] sm:$0xff]
        %v794 = vld [vmem:[#allocation13 + $0x68] sm:$0xf]
        %v795 = vld [vmem:[#allocation13 + $0x6c] sm:$0xff]
        %v796 = vld [vmem:[#allocation13 + $0x74] sm:$0xf]
        %v797 = vld [vmem:[#allocation13 + $0x78] sm:$0xff]
        %v798 = vld [vmem:[#allocation13 + $0x80] sm:$0xf]
        %v799 = vld [vmem:[#allocation13 + $0x84] sm:$0xff]
        %v800 = vld [vmem:[#allocation13 + $0x8c] sm:$0xf]
        %v801 = vld [vmem:[#allocation13 + $0x90] sm:$0xff]
        %v802 = vld [vmem:[#allocation13 + $0x98] sm:$0xf]
        %v803 = vld [vmem:[#allocation13 + $0x9c] sm:$0xff]
        %v804 = vld [vmem:[#allocation13 + $0xa4] sm:$0xf]
        %v805 = vld [vmem:[#allocation13 + $0xa8] sm:$0xff]
        %v806 = vld [vmem:[#allocation13 + $0xb0] sm:$0xf]
        %v807 = vld [vmem:[#allocation13 + $0xb4] sm:$0xff]
        %v808 = vld [vmem:[#allocation13 + $0xbc] sm:$0xf]
        %v809 = vld [vmem:[#allocation14] sm:$0xff]
        %v810 = vld [vmem:[#allocation14 + $0x8] sm:$0xf]
        %v811 = vld [vmem:[#allocation14 + $0xc] sm:$0xff]
        %v812 = vld [vmem:[#allocation14 + $0x14] sm:$0xf]
        %v813 = vld [vmem:[#allocation14 + $0x18] sm:$0xff]
        %v814 = vld [vmem:[#allocation14 + $0x20] sm:$0xf]
        %v815 = vld [vmem:[#allocation14 + $0x24] sm:$0xff]
        %v816 = vld [vmem:[#allocation14 + $0x2c] sm:$0xf]
        %v817 = vld [vmem:[#allocation14 + $0x30] sm:$0xff]
        %v818 = vld [vmem:[#allocation14 + $0x38] sm:$0xf]
        %v819 = vld [vmem:[#allocation14 + $0x3c] sm:$0xff]
        %v820 = vld [vmem:[#allocation14 + $0x44] sm:$0xf]
        %v821 = vld [vmem:[#allocation14 + $0x48] sm:$0xff]
        %v822 = vld [vmem:[#allocation14 + $0x50] sm:$0xf]
        %v823 = vld [vmem:[#allocation14 + $0x54] sm:$0xff]
        %v824 = vld [vmem:[#allocation14 + $0x5c] sm:$0xf]
        %v825 = vld [vmem:[#allocation14 + $0x60] sm:$0xff]
        %v826 = vld [vmem:[#allocation14 + $0x68] sm:$0xf]
        %v827 = vld [vmem:[#allocation14 + $0x6c] sm:$0xff]
        %v828 = vld [vmem:[#allocation14 + $0x74] sm:$0xf]
        %v829 = vld [vmem:[#allocation14 + $0x78] sm:$0xff]
        %v830 = vld [vmem:[#allocation14 + $0x80] sm:$0xf]
        %v831 = vld [vmem:[#allocation14 + $0x84] sm:$0xff]
        %v832 = vld [vmem:[#allocation14 + $0x8c] sm:$0xf]
        %v833 = vld [vmem:[#allocation14 + $0x90] sm:$0xff]
        %v834 = vld [vmem:[#allocation14 + $0x98] sm:$0xf]
        %v835 = vld [vmem:[#allocation14 + $0x9c] sm:$0xff]
        %v836 = vld [vmem:[#allocation14 + $0xa4] sm:$0xf]
        %v837 = vld [vmem:[#allocation14 + $0xa8] sm:$0xff]
        %v838 = vld [vmem:[#allocation14 + $0xb0] sm:$0xf]
        %v839 = vld [vmem:[#allocation14 + $0xb4] sm:$0xff]
        %v840 = vld [vmem:[#allocation14 + $0xbc] sm:$0xf]
        %v841 = vld [vmem:[%s12] sm:$0x7]
        %v842 = vld [vmem:[#allocation16] sm:$0xff]
        %v843 = vld [vmem:[#allocation16 + $0x8] sm:$0xff]
        %v844 = vld [vmem:[#allocation16 + $0x10] sm:$0xff]
        %v845 = vld [vmem:[#allocation16 + $0x18] sm:$0xff]
        %v846 = vld [vmem:[#allocation16 + $0x20] sm:$0xff]
        %v847 = vld [vmem:[#allocation16 + $0x28] sm:$0xff]
        %v848 = vld [vmem:[#allocation16 + $0x30] sm:$0xff]
        %v849 = vld [vmem:[#allocation16 + $0x38] sm:$0xff]
        %v850 = vld [vmem:[#allocation16 + $0x40] sm:$0xff]
        %v851 = vld [vmem:[#allocation16 + $0x48] sm:$0xff]
        %v852 = vld [vmem:[#allocation16 + $0x50] sm:$0xff]
        %v853 = vld [vmem:[#allocation16 + $0x58] sm:$0xff]
        %v854 = vld [vmem:[#allocation16 + $0x60] sm:$0xff]
        %v855 = vld [vmem:[#allocation16 + $0x68] sm:$0xff]
        %v856 = vld [vmem:[#allocation16 + $0x70] sm:$0xff]
        %v857 = vld [vmem:[#allocation16 + $0x78] sm:$0xff]
        %v858 = vld [vmem:[#allocation17] sm:$0xf]
        %v859 = vld [vmem:[#allocation17 + $0x4] sm:$0xf]
        %v860 = vld [vmem:[#allocation17 + $0x8] sm:$0xf]
        %v861 = vld [vmem:[#allocation17 + $0xc] sm:$0xf]
        %v862 = vld [vmem:[#allocation17 + $0x10] sm:$0xf]
        %v863 = vld [vmem:[#allocation17 + $0x14] sm:$0xf]
        %v864 = vld [vmem:[#allocation17 + $0x18] sm:$0xf]
        %v865 = vld [vmem:[#allocation17 + $0x1c] sm:$0xf]
        %v866 = vld [vmem:[#allocation17 + $0x20] sm:$0xf]
        %v867 = vld [vmem:[#allocation17 + $0x24] sm:$0xf]
        %v868 = vld [vmem:[#allocation17 + $0x28] sm:$0xf]
        %v869 = vld [vmem:[#allocation17 + $0x2c] sm:$0xf]
        %v870 = vld [vmem:[#allocation17 + $0x30] sm:$0xf]
        %v871 = vld [vmem:[#allocation17 + $0x34] sm:$0xf]
        %v872 = vld [vmem:[#allocation17 + $0x38] sm:$0xf]
        %v873 = vld [vmem:[#allocation17 + $0x3c] sm:$0xf]
        %v875 = vlaneseq
        %v876 = vshrl.u32 %v875, 7
        %v877 = vsub.s32 0, %v876
        %v878 = vrot.slane %v757, %v877
        %v880 = vmul.f32 %v878, %v753
        %v881 = vmul.f32 %v878, %v754
        %v883 = vlaneseq
        %v884 = vshrl.u32 %v883, 7
        %v885 = vsub.s32 0, %v884
        %v886 = vrot.slane %v758, %v885
        %v888 = vadd.f32 %v880, %v886
        %v889 = vadd.f32 %v881, %v886
        %v890 = vmax.f32 %v888, 0.0
        %v891 = vmax.f32 %v889, 0.0
        %v892 = vsub.f32 0.0, %v890
        %v893 = vsub.f32 0.0, %v891
        %v894 = vmul.f32 %v892, 1.442695
        %v895 = vpow.pop %v894
        %v896 = vmul.f32 %v893, 1.442695
        %v897 = vpow.pop %v896
        %v898 = vmul.f32 %v751, %v749
        %v899 = vmul.f32 %v752, %v750
        %v900 = vsub.f32 1.0, %v751
        %v901 = vsub.f32 1.0, %v752
        %v902 = vmul.f32 %v895, %v755
        %v903 = vmul.f32 %v897, %v756
        %v904 = vsub.f32 1.0, %v895
        %v905 = vsub.f32 1.0, %v897
        %v907 = vlaneseq
        %v908 = vshrl.u32 %v907, 7
        %v909 = vsub.s32 0, %v908
        %v910 = vrot.slane %v759, %v909
        %v912 = vmul.f32 %v904, %v910
        %v913 = vmul.f32 %v905, %v910
        %v914 = vadd.f32 %v902, %v912
        %v915 = vadd.f32 %v903, %v913
        %v916 = vmul.f32 %v900, %v914
        %v917 = vmul.f32 %v901, %v915
        %v918 = vadd.f32 %v898, %v916
        %v919 = vadd.f32 %v899, %v917
        %v921 = vlaneseq
        %v922 = vshrl.u32 %v921, 7
        %v923 = vsub.s32 0, %v922
        %v924 = vrot.slane %v776, %v923
        %926 = vmatprep.subr.mxu0 0.0
        %927 = vmatpush1.msra.mxu0 %v760
        %928 = vmatprep.subr.mxu0 0.0
        %929 = vmatpush1.msra.mxu0 %v761
        %930 = vmatprep.subr.mxu0 0.0
        %931 = vmatpush1.msra.mxu0 %v762
        %932 = vmatprep.subr.mxu0 0.0
        %933 = vmatpush1.msra.mxu0 %v763
        %934 = vmatprep.subr.mxu0 0.0
        %935 = vmatpush1.msra.mxu0 %v764
        %936 = vmatprep.subr.mxu0 0.0
        %937 = vmatpush1.msra.mxu0 %v765
        %938 = vmatprep.subr.mxu0 0.0
        %939 = vmatpush1.msra.mxu0 %v766
        %940 = vmatprep.subr.mxu0 0.0
        %941 = vmatpush1.msra.mxu0 %v767
        %942 = vmatprep.subr.mxu0 0.0
        %943 = vmatpush1.msra.mxu0 %v768
        %944 = vmatprep.subr.mxu0 0.0
        %945 = vmatpush1.msra.mxu0 %v769
        %946 = vmatprep.subr.mxu0 0.0
        %947 = vmatpush1.msra.mxu0 %v770
        %948 = vmatprep.subr.mxu0 0.0
        %949 = vmatpush1.msra.mxu0 %v771
        %950 = vmatprep.subr.mxu0 0.0
        %951 = vmatpush1.msra.mxu0 %v772
        %952 = vmatprep.subr.mxu0 0.0
        %953 = vmatpush1.msra.mxu0 %v773
        %954 = vmatprep.subr.mxu0 0.0
        %955 = vmatpush1.msra.mxu0 %v774
        %956 = vmatprep.subr.mxu0 0.0
        %957 = vmatpush1.msra.mxu0 %v775
        %958 = vmatprep.subr.mxu0 0.0
        %959 = vmatpush1.msra.mxu0 0.0
        %960 = vmatprep.subr.mxu0 0.0
        %961 = vmatpush1.msra.mxu0 0.0
        %962 = vmatprep.subr.mxu0 0.0
        %963 = vmatpush1.msra.mxu0 0.0
        %964 = vmatprep.subr.mxu0 0.0
        %965 = vmatpush1.msra.mxu0 0.0
        %966 = vmatprep.subr.mxu0 0.0
        %967 = vmatpush1.msra.mxu0 0.0
        %968 = vmatprep.subr.mxu0 0.0
        %969 = vmatpush1.msra.mxu0 0.0
        %970 = vmatprep.subr.mxu0 0.0
        %971 = vmatpush1.msra.mxu0 0.0
        %972 = vmatprep.subr.mxu0 0.0
        %973 = vmatpush1.msra.mxu0 0.0
        %974 = vmatprep.subr.mxu0 0.0
        %975 = vmatpush1.msra.mxu0 0.0
        %976 = vmatprep.subr.mxu0 0.0
        %977 = vmatpush1.msra.mxu0 0.0
        %978 = vmatprep.subr.mxu0 0.0
        %979 = vmatpush1.msra.mxu0 0.0
        %980 = vmatprep.subr.mxu0 0.0
        %981 = vmatpush1.msra.mxu0 0.0
        %982 = vmatprep.subr.mxu0 0.0
        %983 = vmatpush1.msra.mxu0 0.0
        %984 = vmatprep.subr.mxu0 0.0
        %985 = vmatpush1.msra.mxu0 0.0
        %986 = vmatprep.subr.mxu0 0.0
        %987 = vmatpush1.msra.mxu0 0.0
        %988 = vmatprep.subr.mxu0 0.0
        %989 = vmatpush1.msra.mxu0 0.0
        %990 = vmatprep.mubr.f32.mxu0 0.0
        %991 = vmatmul.mubr.f32.gmra.mrb[0].mxu0 %v753
        %v992 = vpop.f32.mrb[0].mxu0
        %v993 = vadd.f32 %v924, %v992
        %v994 = vpop.f32.mrb[0].mxu0
        %995 = vmatprep.mubr.f32.mxu0 0.0
        %996 = vmatmul.mubr.f32.gmra.mrb[0].mxu0 %v754
        %v997 = vpop.f32.mrb[0].mxu0
        %v998 = vadd.f32 %v924, %v997
        %v999 = vpop.f32.mrb[0].mxu0
        %1000 = vdwg.mxu0
        %v1001 = vmax.f32 %v993, 0.0
        %v1002 = vmax.f32 %v998, 0.0
        %v1003 = vsub.f32 0.0, %v1001
        %v1004 = vsub.f32 0.0, %v1002
        %v1005 = vmul.f32 %v1003, 1.442695
        %v1006 = vpow.pop %v1005
        %v1007 = vmul.f32 %v1004, 1.442695
        %v1008 = vpow.pop %v1007
        %v1009 = vmul.f32 %v1006, %v747
        %v1010 = vmul.f32 %v1008, %v748
        %v1011 = vpack.c.bf16 %v919, %v918
        %v1012 = vpack.c.bf16 %v752, %v751
        %v1045 = vunpack.c.l.b16 %v809
        %v1046 = vunpack.c.h.b16 %v809
        %v1047 = vunpack.c.l.b16 %v810
        %v1048 = vunpack.c.l.b16 %v811
        %v1049 = vunpack.c.h.b16 %v811
        %v1050 = vunpack.c.l.b16 %v812
        %v1051 = vunpack.c.l.b16 %v813
        %v1052 = vunpack.c.h.b16 %v813
        %v1053 = vunpack.c.l.b16 %v814
        %v1054 = vunpack.c.l.b16 %v815
        %v1055 = vunpack.c.h.b16 %v815
        %v1056 = vunpack.c.l.b16 %v816
        %v1057 = vunpack.c.l.b16 %v817
        %v1058 = vunpack.c.h.b16 %v817
        %v1059 = vunpack.c.l.b16 %v818
        %v1060 = vunpack.c.l.b16 %v819
        %v1061 = vunpack.c.h.b16 %v819
        %v1062 = vunpack.c.l.b16 %v820
        %v1063 = vunpack.c.l.b16 %v821
        %v1064 = vunpack.c.h.b16 %v821
        %v1065 = vunpack.c.l.b16 %v822
        %v1066 = vunpack.c.l.b16 %v823
        %v1067 = vunpack.c.h.b16 %v823
        %v1068 = vunpack.c.l.b16 %v824
        %v1069 = vunpack.c.l.b16 %v825
        %v1070 = vunpack.c.h.b16 %v825
        %v1071 = vunpack.c.l.b16 %v826
        %v1072 = vunpack.c.l.b16 %v827
        %v1073 = vunpack.c.h.b16 %v827
        %v1074 = vunpack.c.l.b16 %v828
        %v1075 = vunpack.c.l.b16 %v829
        %v1076 = vunpack.c.h.b16 %v829
        %v1077 = vunpack.c.l.b16 %v830
        %v1078 = vunpack.c.l.b16 %v831
        %v1079 = vunpack.c.h.b16 %v831
        %v1080 = vunpack.c.l.b16 %v832
        %v1081 = vunpack.c.l.b16 %v833
        %v1082 = vunpack.c.h.b16 %v833
        %v1083 = vunpack.c.l.b16 %v834
        %v1084 = vunpack.c.l.b16 %v835
        %v1085 = vunpack.c.h.b16 %v835
        %v1086 = vunpack.c.l.b16 %v836
        %v1087 = vunpack.c.l.b16 %v837
        %v1088 = vunpack.c.h.b16 %v837
        %v1089 = vunpack.c.l.b16 %v838
        %v1090 = vunpack.c.l.b16 %v839
        %v1091 = vunpack.c.h.b16 %v839
        %v1092 = vunpack.c.l.b16 %v840
        %v1093 = vpack.c.b16 %v1048, %v1045
        %v1094 = vpack.c.b16 %v1049, %v1046
        %v1095 = vpack.c.b16 %v1050, %v1047
        %v1096 = vpack.c.b16 %v1054, %v1051
        %v1097 = vpack.c.b16 %v1055, %v1052
        %v1098 = vpack.c.b16 %v1056, %v1053
        %v1099 = vpack.c.b16 %v1060, %v1057
        %v1100 = vpack.c.b16 %v1061, %v1058
        %v1101 = vpack.c.b16 %v1062, %v1059
        %v1102 = vpack.c.b16 %v1066, %v1063
        %v1103 = vpack.c.b16 %v1067, %v1064
        %v1104 = vpack.c.b16 %v1068, %v1065
        %v1105 = vpack.c.b16 %v1072, %v1069
        %v1106 = vpack.c.b16 %v1073, %v1070
        %v1107 = vpack.c.b16 %v1074, %v1071
        %v1108 = vpack.c.b16 %v1078, %v1075
        %v1109 = vpack.c.b16 %v1079, %v1076
        %v1110 = vpack.c.b16 %v1080, %v1077
        %v1111 = vpack.c.b16 %v1084, %v1081
        %v1112 = vpack.c.b16 %v1085, %v1082
        %v1113 = vpack.c.b16 %v1086, %v1083
        %v1114 = vpack.c.b16 %v1090, %v1087
        %v1115 = vpack.c.b16 %v1091, %v1088
        %v1116 = vpack.c.b16 %v1092, %v1089
        %1141 = vmatprep.subr.bf16.mxu0 %v1094
        %1142 = vmatpush1.bf16.msra.mxu0 %v1093
        %1143 = vmatprep.subr.bf16.mxu0 %v1097
        %1144 = vmatpush1.bf16.msra.mxu0 %v1096
        %1145 = vmatprep.subr.bf16.mxu0 %v1100
        %1146 = vmatpush1.bf16.msra.mxu0 %v1099
        %1147 = vmatprep.subr.bf16.mxu0 %v1103
        %1148 = vmatpush1.bf16.msra.mxu0 %v1102
        %1149 = vmatprep.subr.bf16.mxu0 %v1106
        %1150 = vmatpush1.bf16.msra.mxu0 %v1105
        %1151 = vmatprep.subr.bf16.mxu0 %v1109
        %1152 = vmatpush1.bf16.msra.mxu0 %v1108
        %1153 = vmatprep.subr.bf16.mxu0 %v1112
        %1154 = vmatpush1.bf16.msra.mxu0 %v1111
        %1155 = vmatprep.subr.bf16.mxu0 %v1115
        %1156 = vmatpush1.bf16.msra.mxu0 %v1114
        %1157 = vmatprep.subr.bf16.mxu0 0
        %1158 = vmatpush1.bf16.msra.mxu0 0
        %1159 = vmatprep.subr.bf16.mxu0 0
        %1160 = vmatpush1.bf16.msra.mxu0 0
        %1161 = vmatprep.subr.bf16.mxu0 0
        %1162 = vmatpush1.bf16.msra.mxu0 0
        %1163 = vmatprep.subr.bf16.mxu0 0
        %1164 = vmatpush1.bf16.msra.mxu0 0
        %1165 = vmatprep.subr.bf16.mxu0 0
        %1166 = vmatpush1.bf16.msra.mxu0 0
        %1167 = vmatprep.subr.bf16.mxu0 0
        %1168 = vmatpush1.bf16.msra.mxu0 0
        %1169 = vmatprep.subr.bf16.mxu0 0
        %1170 = vmatpush1.bf16.msra.mxu0 0
        %1171 = vmatprep.subr.bf16.mxu0 0
        %1172 = vmatpush1.bf16.msra.mxu0 0
        %1173 = vmatprep.mubr.bf16.mxu0 0
        %1174 = vmatmul.mubr.bf16.gmra.mrb[0].mxu0 %v1012
        %v1175 = vpop.f32.mrb[0].mxu0
        %v1176 = vadd.f32 0.0, %v1175
        %v1177 = vpop.f32.mrb[0].mxu0
        %v1178 = vadd.f32 0.0, %v1177
        %v1179 = vpop.f32.mrb[0].mxu0
        %v1180 = vadd.f32 0.0, %v1179
        %v1181 = vpop.f32.mrb[0].mxu0
        %v1182 = vadd.f32 0.0, %v1181
        %1183 = vdwg.mxu0
        %1184 = vmatprep.subr.bf16.mxu0 0
        %1185 = vmatpush1.bf16.msra.mxu0 %v1095
        %1186 = vmatprep.subr.bf16.mxu0 0
        %1187 = vmatpush1.bf16.msra.mxu0 %v1098
        %1188 = vmatprep.subr.bf16.mxu0 0
        %1189 = vmatpush1.bf16.msra.mxu0 %v1101
        %1190 = vmatprep.subr.bf16.mxu0 0
        %1191 = vmatpush1.bf16.msra.mxu0 %v1104
        %1192 = vmatprep.subr.bf16.mxu0 0
        %1193 = vmatpush1.bf16.msra.mxu0 %v1107
        %1194 = vmatprep.subr.bf16.mxu0 0
        %1195 = vmatpush1.bf16.msra.mxu0 %v1110
        %1196 = vmatprep.subr.bf16.mxu0 0
        %1197 = vmatpush1.bf16.msra.mxu0 %v1113
        %1198 = vmatprep.subr.bf16.mxu0 0
        %1199 = vmatpush1.bf16.msra.mxu0 %v1116
        %1200 = vmatprep.subr.bf16.mxu0 0
        %1201 = vmatpush1.bf16.msra.mxu0 0
        %1202 = vmatprep.subr.bf16.mxu0 0
        %1203 = vmatpush1.bf16.msra.mxu0 0
        %1204 = vmatprep.subr.bf16.mxu0 0
        %1205 = vmatpush1.bf16.msra.mxu0 0
        %1206 = vmatprep.subr.bf16.mxu0 0
        %1207 = vmatpush1.bf16.msra.mxu0 0
        %1208 = vmatprep.subr.bf16.mxu0 0
        %1209 = vmatpush1.bf16.msra.mxu0 0
        %1210 = vmatprep.subr.bf16.mxu0 0
        %1211 = vmatpush1.bf16.msra.mxu0 0
        %1212 = vmatprep.subr.bf16.mxu0 0
        %1213 = vmatpush1.bf16.msra.mxu0 0
        %1214 = vmatprep.subr.bf16.mxu0 0
        %1215 = vmatpush1.bf16.msra.mxu0 0
        %1216 = vmatprep.mubr.bf16.mxu0 0
        %1217 = vmatmul.mubr.bf16.gmra.mrb[0].mxu0 %v1012
        %v1218 = vpop.f32.mrb[0].mxu0
        %v1219 = vadd.f32 0.0, %v1218
        %v1220 = vpop.f32.mrb[0].mxu0
        %v1221 = vpop.f32.mrb[0].mxu0
        %v1222 = vadd.f32 0.0, %v1221
        %v1223 = vpop.f32.mrb[0].mxu0
        %1224 = vdwg.mxu0
        %v1257 = vunpack.c.l.b16 %v777
        %v1258 = vunpack.c.h.b16 %v777
        %v1259 = vunpack.c.l.b16 %v778
        %v1260 = vunpack.c.l.b16 %v779
        %v1261 = vunpack.c.h.b16 %v779
        %v1262 = vunpack.c.l.b16 %v780
        %v1263 = vunpack.c.l.b16 %v781
        %v1264 = vunpack.c.h.b16 %v781
        %v1265 = vunpack.c.l.b16 %v782
        %v1266 = vunpack.c.l.b16 %v783
        %v1267 = vunpack.c.h.b16 %v783
        %v1268 = vunpack.c.l.b16 %v784
        %v1269 = vunpack.c.l.b16 %v785
        %v1270 = vunpack.c.h.b16 %v785
        %v1271 = vunpack.c.l.b16 %v786
        %v1272 = vunpack.c.l.b16 %v787
        %v1273 = vunpack.c.h.b16 %v787
        %v1274 = vunpack.c.l.b16 %v788
        %v1275 = vunpack.c.l.b16 %v789
        %v1276 = vunpack.c.h.b16 %v789
        %v1277 = vunpack.c.l.b16 %v790
        %v1278 = vunpack.c.l.b16 %v791
        %v1279 = vunpack.c.h.b16 %v791
        %v1280 = vunpack.c.l.b16 %v792
        %v1281 = vunpack.c.l.b16 %v793
        %v1282 = vunpack.c.h.b16 %v793
        %v1283 = vunpack.c.l.b16 %v794
        %v1284 = vunpack.c.l.b16 %v795
        %v1285 = vunpack.c.h.b16 %v795
        %v1286 = vunpack.c.l.b16 %v796
        %v1287 = vunpack.c.l.b16 %v797
        %v1288 = vunpack.c.h.b16 %v797
        %v1289 = vunpack.c.l.b16 %v798
        %v1290 = vunpack.c.l.b16 %v799
        %v1291 = vunpack.c.h.b16 %v799
        %v1292 = vunpack.c.l.b16 %v800
        %v1293 = vunpack.c.l.b16 %v801
        %v1294 = vunpack.c.h.b16 %v801
        %v1295 = vunpack.c.l.b16 %v802
        %v1296 = vunpack.c.l.b16 %v803
        %v1297 = vunpack.c.h.b16 %v803
        %v1298 = vunpack.c.l.b16 %v804
        %v1299 = vunpack.c.l.b16 %v805
        %v1300 = vunpack.c.h.b16 %v805
        %v1301 = vunpack.c.l.b16 %v806
        %v1302 = vunpack.c.l.b16 %v807
        %v1303 = vunpack.c.h.b16 %v807
        %v1304 = vunpack.c.l.b16 %v808
        %v1305 = vpack.c.b16 %v1260, %v1257
        %v1306 = vpack.c.b16 %v1261, %v1258
        %v1307 = vpack.c.b16 %v1262, %v1259
        %v1308 = vpack.c.b16 %v1266, %v1263
        %v1309 = vpack.c.b16 %v1267, %v1264
        %v1310 = vpack.c.b16 %v1268, %v1265
        %v1311 = vpack.c.b16 %v1272, %v1269
        %v1312 = vpack.c.b16 %v1273, %v1270
        %v1313 = vpack.c.b16 %v1274, %v1271
        %v1314 = vpack.c.b16 %v1278, %v1275
        %v1315 = vpack.c.b16 %v1279, %v1276
        %v1316 = vpack.c.b16 %v1280, %v1277
        %v1317 = vpack.c.b16 %v1284, %v1281
        %v1318 = vpack.c.b16 %v1285, %v1282
        %v1319 = vpack.c.b16 %v1286, %v1283
        %v1320 = vpack.c.b16 %v1290, %v1287
        %v1321 = vpack.c.b16 %v1291, %v1288
        %v1322 = vpack.c.b16 %v1292, %v1289
        %v1323 = vpack.c.b16 %v1296, %v1293
        %v1324 = vpack.c.b16 %v1297, %v1294
        %v1325 = vpack.c.b16 %v1298, %v1295
        %v1326 = vpack.c.b16 %v1302, %v1299
        %v1327 = vpack.c.b16 %v1303, %v1300
        %v1328 = vpack.c.b16 %v1304, %v1301
        %1353 = vmatprep.subr.bf16.mxu0 %v1306
        %1354 = vmatpush1.bf16.msra.mxu0 %v1305
        %1355 = vmatprep.subr.bf16.mxu0 %v1309
        %1356 = vmatpush1.bf16.msra.mxu0 %v1308
        %1357 = vmatprep.subr.bf16.mxu0 %v1312
        %1358 = vmatpush1.bf16.msra.mxu0 %v1311
        %1359 = vmatprep.subr.bf16.mxu0 %v1315
        %1360 = vmatpush1.bf16.msra.mxu0 %v1314
        %1361 = vmatprep.subr.bf16.mxu0 %v1318
        %1362 = vmatpush1.bf16.msra.mxu0 %v1317
        %1363 = vmatprep.subr.bf16.mxu0 %v1321
        %1364 = vmatpush1.bf16.msra.mxu0 %v1320
        %1365 = vmatprep.subr.bf16.mxu0 %v1324
        %1366 = vmatpush1.bf16.msra.mxu0 %v1323
        %1367 = vmatprep.subr.bf16.mxu0 %v1327
        %1368 = vmatpush1.bf16.msra.mxu0 %v1326
        %1369 = vmatprep.subr.bf16.mxu0 0
        %1370 = vmatpush1.bf16.msra.mxu0 0
        %1371 = vmatprep.subr.bf16.mxu0 0
        %1372 = vmatpush1.bf16.msra.mxu0 0
        %1373 = vmatprep.subr.bf16.mxu0 0
        %1374 = vmatpush1.bf16.msra.mxu0 0
        %1375 = vmatprep.subr.bf16.mxu0 0
        %1376 = vmatpush1.bf16.msra.mxu0 0
        %1377 = vmatprep.subr.bf16.mxu0 0
        %1378 = vmatpush1.bf16.msra.mxu0 0
        %1379 = vmatprep.subr.bf16.mxu0 0
        %1380 = vmatpush1.bf16.msra.mxu0 0
        %1381 = vmatprep.subr.bf16.mxu0 0
        %1382 = vmatpush1.bf16.msra.mxu0 0
        %1383 = vmatprep.subr.bf16.mxu0 0
        %1384 = vmatpush1.bf16.msra.mxu0 0
        %1385 = vmatprep.mubr.bf16.mxu0 0
        %1386 = vmatmul.mubr.bf16.gmra.mrb[0].mxu0 %v1011
        %v1387 = vpop.f32.mrb[0].mxu0
        %v1388 = vadd.f32 %v1176, %v1387
        %v1389 = vpop.f32.mrb[0].mxu0
        %v1390 = vadd.f32 %v1178, %v1389
        %v1391 = vpop.f32.mrb[0].mxu0
        %v1392 = vadd.f32 %v1180, %v1391
        %v1393 = vpop.f32.mrb[0].mxu0
        %v1394 = vadd.f32 %v1182, %v1393
        %1395 = vdwg.mxu0
        %1396 = vmatprep.subr.bf16.mxu0 0
        %1397 = vmatpush1.bf16.msra.mxu0 %v1307
        %1398 = vmatprep.subr.bf16.mxu0 0
        %1399 = vmatpush1.bf16.msra.mxu0 %v1310
        %1400 = vmatprep.subr.bf16.mxu0 0
        %1401 = vmatpush1.bf16.msra.mxu0 %v1313
        %1402 = vmatprep.subr.bf16.mxu0 0
        %1403 = vmatpush1.bf16.msra.mxu0 %v1316
        %1404 = vmatprep.subr.bf16.mxu0 0
        %1405 = vmatpush1.bf16.msra.mxu0 %v1319
        %1406 = vmatprep.subr.bf16.mxu0 0
        %1407 = vmatpush1.bf16.msra.mxu0 %v1322
        %1408 = vmatprep.subr.bf16.mxu0 0
        %1409 = vmatpush1.bf16.msra.mxu0 %v1325
        %1410 = vmatprep.subr.bf16.mxu0 0
        %1411 = vmatpush1.bf16.msra.mxu0 %v1328
        %1412 = vmatprep.subr.bf16.mxu0 0
        %1413 = vmatpush1.bf16.msra.mxu0 0
        %1414 = vmatprep.subr.bf16.mxu0 0
        %1415 = vmatpush1.bf16.msra.mxu0 0
        %1416 = vmatprep.subr.bf16.mxu0 0
        %1417 = vmatpush1.bf16.msra.mxu0 0
        %1418 = vmatprep.subr.bf16.mxu0 0
        %1419 = vmatpush1.bf16.msra.mxu0 0
        %1420 = vmatprep.subr.bf16.mxu0 0
        %1421 = vmatpush1.bf16.msra.mxu0 0
        %1422 = vmatprep.subr.bf16.mxu0 0
        %1423 = vmatpush1.bf16.msra.mxu0 0
        %1424 = vmatprep.subr.bf16.mxu0 0
        %1425 = vmatpush1.bf16.msra.mxu0 0
        %1426 = vmatprep.subr.bf16.mxu0 0
        %1427 = vmatpush1.bf16.msra.mxu0 0
        %1428 = vmatprep.mubr.bf16.mxu0 0
        %1429 = vmatmul.mubr.bf16.gmra.mrb[0].mxu0 %v1011
        %v1430 = vpop.f32.mrb[0].mxu0
        %v1431 = vadd.f32 %v1219, %v1430
        %v1432 = vpop.f32.mrb[0].mxu0
        %v1433 = vpop.f32.mrb[0].mxu0
        %v1434 = vadd.f32 %v1222, %v1433
        %v1435 = vpop.f32.mrb[0].mxu0
        %1436 = vdwg.mxu0
        %v1438 = vlaneseq
        %v1439 = vshrl.u32 %v1438, 7
        %v1440 = vsub.s32 0, %v1439
        %v1441 = vrot.slane %v841, %v1440
        %v1442 = vlaneseq
        %v1443 = vshrl.u32 %v1442, 7
        %v1444 = vsub.s32 1, %v1443
        %v1445 = vrot.slane %v841, %v1444
        %v1446 = vlaneseq
        %v1447 = vshrl.u32 %v1446, 7
        %v1448 = vsub.s32 2, %v1447
        %v1449 = vrot.slane %v841, %v1448
        %v1453 = vadd.f32 %v1388, %v1441
        %v1454 = vadd.f32 %v1390, %v1445
        %v1455 = vadd.f32 %v1431, %v1449
        %v1456 = vadd.f32 %v1392, %v1441
        %v1457 = vadd.f32 %v1394, %v1445
        %v1458 = vadd.f32 %v1434, %v1449
        %v1459 = vpack.c.bf16 %v1010, %v1009
        %v1476 = vunpack.c.l.b16 %v842
        %v1477 = vunpack.c.h.b16 %v842
        %v1478 = vunpack.c.l.b16 %v843
        %v1479 = vunpack.c.h.b16 %v843
        %v1480 = vunpack.c.l.b16 %v844
        %v1481 = vunpack.c.h.b16 %v844
        %v1482 = vunpack.c.l.b16 %v845
        %v1483 = vunpack.c.h.b16 %v845
        %v1484 = vunpack.c.l.b16 %v846
        %v1485 = vunpack.c.h.b16 %v846
        %v1486 = vunpack.c.l.b16 %v847
        %v1487 = vunpack.c.h.b16 %v847
        %v1488 = vunpack.c.l.b16 %v848
        %v1489 = vunpack.c.h.b16 %v848
        %v1490 = vunpack.c.l.b16 %v849
        %v1491 = vunpack.c.h.b16 %v849
        %v1492 = vunpack.c.l.b16 %v850
        %v1493 = vunpack.c.h.b16 %v850
        %v1494 = vunpack.c.l.b16 %v851
        %v1495 = vunpack.c.h.b16 %v851
        %v1496 = vunpack.c.l.b16 %v852
        %v1497 = vunpack.c.h.b16 %v852
        %v1498 = vunpack.c.l.b16 %v853
        %v1499 = vunpack.c.h.b16 %v853
        %v1500 = vunpack.c.l.b16 %v854
        %v1501 = vunpack.c.h.b16 %v854
        %v1502 = vunpack.c.l.b16 %v855
        %v1503 = vunpack.c.h.b16 %v855
        %v1504 = vunpack.c.l.b16 %v856
        %v1505 = vunpack.c.h.b16 %v856
        %v1506 = vunpack.c.l.b16 %v857
        %v1507 = vunpack.c.h.b16 %v857
        %v1508 = vpack.c.b16 %v1478, %v1476
        %v1509 = vpack.c.b16 %v1479, %v1477
        %v1510 = vpack.c.b16 %v1482, %v1480
        %v1511 = vpack.c.b16 %v1483, %v1481
        %v1512 = vpack.c.b16 %v1486, %v1484
        %v1513 = vpack.c.b16 %v1487, %v1485
        %v1514 = vpack.c.b16 %v1490, %v1488
        %v1515 = vpack.c.b16 %v1491, %v1489
        %v1516 = vpack.c.b16 %v1494, %v1492
        %v1517 = vpack.c.b16 %v1495, %v1493
        %v1518 = vpack.c.b16 %v1498, %v1496
        %v1519 = vpack.c.b16 %v1499, %v1497
        %v1520 = vpack.c.b16 %v1502, %v1500
        %v1521 = vpack.c.b16 %v1503, %v1501
        %v1522 = vpack.c.b16 %v1506, %v1504
        %v1523 = vpack.c.b16 %v1507, %v1505
        %1540 = vmatprep.subr.bf16.mxu0 %v1509
        %1541 = vmatpush1.bf16.msra.mxu0 %v1508
        %1542 = vmatprep.subr.bf16.mxu0 %v1511
        %1543 = vmatpush1.bf16.msra.mxu0 %v1510
        %1544 = vmatprep.subr.bf16.mxu0 %v1513
        %1545 = vmatpush1.bf16.msra.mxu0 %v1512
        %1546 = vmatprep.subr.bf16.mxu0 %v1515
        %1547 = vmatpush1.bf16.msra.mxu0 %v1514
        %1548 = vmatprep.subr.bf16.mxu0 %v1517
        %1549 = vmatpush1.bf16.msra.mxu0 %v1516
        %1550 = vmatprep.subr.bf16.mxu0 %v1519
        %1551 = vmatpush1.bf16.msra.mxu0 %v1518
        %1552 = vmatprep.subr.bf16.mxu0 %v1521
        %1553 = vmatpush1.bf16.msra.mxu0 %v1520
        %1554 = vmatprep.subr.bf16.mxu0 %v1523
        %1555 = vmatpush1.bf16.msra.mxu0 %v1522
        %1556 = vmatprep.subr.bf16.mxu0 0
        %1557 = vmatpush1.bf16.msra.mxu0 0
        %1558 = vmatprep.subr.bf16.mxu0 0
        %1559 = vmatpush1.bf16.msra.mxu0 0
        %1560 = vmatprep.subr.bf16.mxu0 0
        %1561 = vmatpush1.bf16.msra.mxu0 0
        %1562 = vmatprep.subr.bf16.mxu0 0
        %1563 = vmatpush1.bf16.msra.mxu0 0
        %1564 = vmatprep.subr.bf16.mxu0 0
        %1565 = vmatpush1.bf16.msra.mxu0 0
        %1566 = vmatprep.subr.bf16.mxu0 0
        %1567 = vmatpush1.bf16.msra.mxu0 0
        %1568 = vmatprep.subr.bf16.mxu0 0
        %1569 = vmatpush1.bf16.msra.mxu0 0
        %1570 = vmatprep.subr.bf16.mxu0 0
        %1571 = vmatpush1.bf16.msra.mxu0 0
        %1572 = vmatprep.mubr.bf16.mxu0 0
        %1573 = vmatmul.mubr.bf16.gmra.mrb[0].mxu0 %v1459
        %v1574 = vpop.f32.mrb[0].mxu0
        %v1575 = vadd.f32 0.0, %v1574
        %v1576 = vpop.f32.mrb[0].mxu0
        %v1577 = vadd.f32 0.0, %v1576
        %v1578 = vpop.f32.mrb[0].mxu0
        %v1579 = vadd.f32 0.0, %v1578
        %v1580 = vpop.f32.mrb[0].mxu0
        %v1581 = vadd.f32 0.0, %v1580
        %1582 = vdwg.mxu0
        %v1583 = vadd.f32 %v1453, %v1575
        %v1584 = vadd.f32 %v1456, %v1579
        %v1585 = vmul.f32 %v1583, 0.5
        %v1586 = vmul.f32 %v1584, 0.5
        %v1587 = vtanh.pop %v1585
        %v1588 = vtanh.pop %v1586
        %v1589 = vmul.f32 %v1587, 0.5
        %v1590 = vmul.f32 %v1588, 0.5
        %v1591 = vadd.f32 %v1589, 0.5
        %v1592 = vadd.f32 %v1590, 0.5
        %v1593 = vadd.f32 %v1454, %v1577
        %v1594 = vadd.f32 %v1457, %v1581
        %v1595 = vmul.f32 %v1593, 0.5
        %v1596 = vmul.f32 %v1594, 0.5
        %v1597 = vtanh.pop %v1595
        %v1598 = vtanh.pop %v1596
        %v1599 = vmul.f32 %v1597, 0.5
        %v1600 = vmul.f32 %v1598, 0.5
        %v1601 = vadd.f32 %v1599, 0.5
        %v1602 = vadd.f32 %v1600, 0.5
        %v1603 = vmul.f32 %v1591, %v1009
        %v1604 = vmul.f32 %v1592, %v1010
        %v1605 = vpack.c.bf16 %v1604, %v1603
        %v1622 = vunpack.c.l.b16 %v858
        %v1623 = vunpack.c.l.b16 %v859
        %v1624 = vunpack.c.l.b16 %v860
        %v1625 = vunpack.c.l.b16 %v861
        %v1626 = vunpack.c.l.b16 %v862
        %v1627 = vunpack.c.l.b16 %v863
        %v1628 = vunpack.c.l.b16 %v864
        %v1629 = vunpack.c.l.b16 %v865
        %v1630 = vunpack.c.l.b16 %v866
        %v1631 = vunpack.c.l.b16 %v867
        %v1632 = vunpack.c.l.b16 %v868
        %v1633 = vunpack.c.l.b16 %v869
        %v1634 = vunpack.c.l.b16 %v870
        %v1635 = vunpack.c.l.b16 %v871
        %v1636 = vunpack.c.l.b16 %v872
        %v1637 = vunpack.c.l.b16 %v873
        %v1638 = vpack.c.b16 %v1623, %v1622
        %v1639 = vpack.c.b16 %v1625, %v1624
        %v1640 = vpack.c.b16 %v1627, %v1626
        %v1641 = vpack.c.b16 %v1629, %v1628
        %v1642 = vpack.c.b16 %v1631, %v1630
        %v1643 = vpack.c.b16 %v1633, %v1632
        %v1644 = vpack.c.b16 %v1635, %v1634
        %v1645 = vpack.c.b16 %v1637, %v1636
        %1654 = vmatprep.subr.bf16.mxu0 0
        %1655 = vmatpush1.bf16.msra.mxu0 %v1638
        %1656 = vmatprep.subr.bf16.mxu0 0
        %1657 = vmatpush1.bf16.msra.mxu0 %v1639
        %1658 = vmatprep.subr.bf16.mxu0 0
        %1659 = vmatpush1.bf16.msra.mxu0 %v1640
        %1660 = vmatprep.subr.bf16.mxu0 0
        %1661 = vmatpush1.bf16.msra.mxu0 %v1641
        %1662 = vmatprep.subr.bf16.mxu0 0
        %1663 = vmatpush1.bf16.msra.mxu0 %v1642
        %1664 = vmatprep.subr.bf16.mxu0 0
        %1665 = vmatpush1.bf16.msra.mxu0 %v1643
        %1666 = vmatprep.subr.bf16.mxu0 0
        %1667 = vmatpush1.bf16.msra.mxu0 %v1644
        %1668 = vmatprep.subr.bf16.mxu0 0
        %1669 = vmatpush1.bf16.msra.mxu0 %v1645
        %1670 = vmatprep.subr.bf16.mxu0 0
        %1671 = vmatpush1.bf16.msra.mxu0 0
        %1672 = vmatprep.subr.bf16.mxu0 0
        %1673 = vmatpush1.bf16.msra.mxu0 0
        %1674 = vmatprep.subr.bf16.mxu0 0
        %1675 = vmatpush1.bf16.msra.mxu0 0
        %1676 = vmatprep.subr.bf16.mxu0 0
        %1677 = vmatpush1.bf16.msra.mxu0 0
        %1678 = vmatprep.subr.bf16.mxu0 0
        %1679 = vmatpush1.bf16.msra.mxu0 0
        %1680 = vmatprep.subr.bf16.mxu0 0
        %1681 = vmatpush1.bf16.msra.mxu0 0
        %1682 = vmatprep.subr.bf16.mxu0 0
        %1683 = vmatpush1.bf16.msra.mxu0 0
        %1684 = vmatprep.subr.bf16.mxu0 0
        %1685 = vmatpush1.bf16.msra.mxu0 0
        %1686 = vmatprep.mubr.bf16.mxu0 0
        %1687 = vmatmul.mubr.bf16.gmra.mrb[0].mxu0 %v1605
        %v1688 = vpop.f32.mrb[0].mxu0
        %v1689 = vadd.f32 0.0, %v1688
        %v1690 = vpop.f32.mrb[0].mxu0
        %v1691 = vpop.f32.mrb[0].mxu0
        %v1692 = vadd.f32 0.0, %v1691
        %v1693 = vpop.f32.mrb[0].mxu0
        %1694 = vdwg.mxu0
        %v1695 = vadd.f32 %v1455, %v1689
        %v1696 = vadd.f32 %v1458, %v1692
        %v1697 = vtanh.pop %v1695
        %v1698 = vtanh.pop %v1696
        %v1699 = vsub.f32 %v1697, %v1009
        %v1700 = vsub.f32 %v1698, %v1010
        %v1701 = vmul.f32 %v1601, %v1699
        %v1702 = vmul.f32 %v1602, %v1700
        %v1703 = vadd.f32 %v1009, %v1701
        %v1704 = vadd.f32 %v1010, %v1702
        %1705 = vst [vmem:[%s739] sm:$0xff] %v1703
        %1706 = vst [vmem:[%s739 + $0x18] sm:$0xff] %v1704
        %1707 = vst [vmem:[%s739 + $0x8] sm:$0xff] %v1701
        %1708 = vst [vmem:[%s739 + $0x20] sm:$0xff] %v1702
        %1709 = vst [vmem:[%s739 + $0x10] sm:$0xff] %v918
        %1710 = vst [vmem:[%s739 + $0x28] sm:$0xff] %v919
        %s1711 = sand.u32 %s389, 1
        %s1712 = scalar_lea.sflag [#allocation4], %s1711
        %s1713 = sand.u32 %s389, 1
        %s1714 = smul.addr %s1713, 48
        %s1715 = scalar_lea.vmem [#allocation19], %s1714
        // Predicated region
        $region121: #{tpu_custom_call.1} parent=79 // pred_check
          %p1716 = pneg %p399
        $region122: #{tpu_custom_call.1} parent=79 // pred_check_branch
          %1718 = sbr.rel (%p1716) target = $region124
        $region123: #{tpu_custom_call.1} parent=79 // pred_region
          %s1719 = smul.u32 2, %s41
          %s1721 = ssub.s32 768, 768
          %1722 = vsyncadd %s1712, %s1721
          %s1723 = smul.addr %s1719, 3
          %s1724 = smul.addr %s1723, 128
          %s1725 = scalar_lea.hbm %s15, %s1724
          %s1726 = sshll.u32 %s1715, 4
          %s1727 = int_to_ptr.vmem [resolvable:$true] %s1726
          %1732 = dma.vmem_to_hbm [thread:$0]  %s1727, 768, %s1725, %s1712, 384, 384, 24
        $region124: #{tpu_custom_call.1} parent=79 // pred_fallthru
          _
      $region80: #{tpu_custom_call.1} parent=5 // pred_fallthru
        _
      %p1733 = scmp.le.s32.totalorder 2, %s36
      // Predicated region
      $region125: #{tpu_custom_call.1} parent=5 // pred_check
        %p1734 = pneg %p1733
      $region126: #{tpu_custom_call.1} parent=5 // pred_check_branch
        %1736 = sbr.rel (%p1734) target = $region128
      $region127: #{tpu_custom_call.1} parent=5 // pred_region
        %s1737 = ssub.s32 %s36, 2
        // Predicated region
        $region129: #{tpu_custom_call.1} parent=127 // pred_check
          %p1738 = pneg %p405
        $region130: #{tpu_custom_call.1} parent=127 // pred_check_branch
          %1740 = sbr.rel (%p1738) target = $region132
        $region131: #{tpu_custom_call.1} parent=127 // pred_region
          %s1741 = sand.u32 %s390, 1
          %s1742 = scalar_lea.sflag [#allocation4], %s1741
          %s1743 = sand.u32 %s390, 1
          %s1744 = smul.addr %s1743, 48
          %s1745 = scalar_lea.vmem [#allocation19], %s1744
          %1746 = dma.done %s1742, 768
        $region132: #{tpu_custom_call.1} parent=127 // pred_fallthru
          _
      $region128: #{tpu_custom_call.1} parent=5 // pred_fallthru
        _
    $region6: #{tpu_custom_call.1} parent=1 // loop_footer
      %s40 = sadd.s32 1, %s36
    $region7: #{tpu_custom_call.1} parent=1 // loop_footer_branch
      %35 = sbr.rel target = $region3
    $region8: #{tpu_custom_call.1} parent=1 // loop_exit
      _
    %1747 = vsyncpa [#allocation3], 1
    %s1748 = scalar_lea.sflag [#allocation3], 1
    %1749 = vsyncpa %s1748, 1
    %1750 = vsyncpa [#allocation6], 1
    %s1751 = scalar_lea.sflag [#allocation6], 1
    %1752 = vsyncpa %s1751, 1
    %1753 = vsyncpa [#allocation9], 1
    %s1754 = scalar_lea.sflag [#allocation9], 1
    %1755 = vsyncpa %s1754, 1
    %1756 = vsyncpa [#allocation12], 1
    %1757 = vsyncpa [#allocation15], 1
    %1758 = vsyncpa [#allocation18], 1
    %1759 = vsyncpa [#allocation4], 1
    %s1760 = scalar_lea.sflag [#allocation4], 1
    %1761 = vsyncpa %s1760, 1

</llo_original>
